<compile_context>
chip_gen: v7x
topology: tpu7x:2x2x1
jax: 0.10.0
libtpu: 0.0.40
codegen_flags: <defaults>
</compile_context>

<pallas_src>
import jax
import jax.numpy as jnp
import numpy as np
from jax.experimental import pallas as pl
from jax.experimental.pallas import tpu as pltpu


# ----------------------------------------------------------------------------
# Pallas kernel: full FNO1d forward for one batch tile (TB rows).
# ----------------------------------------------------------------------------
def fno1d_kernel(h_ref, a_ref, ab_ref, a3_ref, b3_ref, w2_ref, b2_ref, out_ref):
    """One batch tile: 5 lane-dense matmuls, zero in-kernel relayouts.

    h_ref  : (TB, S*W)       bf16  fc0-lifted activations (s-major, ch minor)
    a_ref  : (L-1, S*W, S*W) bf16  fused Fourier-layer operators (spectral+conv)
    ab_ref : (L-1, 1, S*W)   f32   per-layer conv biases (tiled over spatial)
    a3_ref : (S*W, S*FC)     bf16  last Fourier layer with fc1 folded in
    b3_ref : (1, S*FC)       f32
    w2_ref : (S*FC, S*O)     bf16  fc2 as block-diagonal I_S (x) fc2_w^T
    b2_ref : (1, S*O)        f32
    out_ref: (TB, S*O)       f32
    """
    h = h_ref[...]
    # Fourier layers 0..L-2: fused (spectral + 1x1 conv) matmul, bias, ReLU.
    for l in range(a_ref.shape[0]):
        z = jnp.dot(h, a_ref[l], preferred_element_type=jnp.float32) + ab_ref[l]
        h = jnp.maximum(z, 0.0).astype(jnp.bfloat16)
    # Last Fourier layer (no ReLU in the module) with fc1 + its ReLU folded in.
    z = jnp.dot(h, a3_ref[...], preferred_element_type=jnp.float32) + b3_ref[...]
    h = jnp.maximum(z, 0.0).astype(jnp.bfloat16)
    # fc2 (block-diagonal over spatial), f32 output.
    out_ref[...] = (jnp.dot(h, w2_ref[...], preferred_element_type=jnp.float32)
                    + b2_ref[...])


# ----------------------------------------------------------------------------
# Wrapper helpers: fused operators, batch tiling.
# ----------------------------------------------------------------------------
def _build_operators(params, S):
    """Precompute the fused per-layer dense operators (wrapper-side, once).

    Flattened layout everywhere: index = s * C + c (spatial major, channel
    minor), so h0.reshape(B, S*W) and out.reshape(B, S, out_dim) are free.
    """
    L, W, _, M = params["sp_wr"].shape
    FC = params["fc1_w"].shape[0]
    out_dim = params["fc2_w"].shape[0]

    k = jnp.arange(M, dtype=jnp.float32)[:, None]
    s = jnp.arange(S, dtype=jnp.float32)[None, :]
    ang = 2.0 * jnp.pi * k * s / S                               # (M, S)
    Fc, Fs = jnp.cos(ang), jnp.sin(ang)
    # irfft per-mode weights: DC (and Nyquist, if retained) count once.
    c = jnp.full((M,), 2.0, dtype=jnp.float32).at[0].set(1.0)
    if M - 1 == S // 2:
        c = c.at[M - 1].set(1.0)
    coef = (c / S)[:, None, None]
    # cos/sin of 2*pi*k*(s - t)/S, per retained mode k.
    cosd = coef * (jnp.einsum("ks,kt->kst", Fc, Fc) + jnp.einsum("ks,kt->kst", Fs, Fs))
    sind = coef * (jnp.einsum("ks,kt->kst", Fs, Fc) - jnp.einsum("ks,kt->kst", Fc, Fs))
    eye_s = jnp.eye(S, dtype=jnp.float32)

    a_layers, b_layers = [], []
    for l in range(L):
        wr = params["sp_wr"][l]                                   # (W, W, M) = (in, out, k)
        wi = params["sp_wi"][l]
        # SpectralConv1d as a dense operator on (s, in) -> (t, out).  The
        # imaginary parts of the DC / Nyquist bins drop out automatically
        # (sin term is zero there), matching torch.fft.irfft.
        a_spec = (jnp.einsum("kst,iok->sito", cosd, wr)
                  + jnp.einsum("kst,iok->sito", sind, wi))        # (S, W, S, W)
        # 1x1 Conv1d: delta_{s,t} * conv_w[out, in].
        a_conv = jnp.einsum("st,oi->sito", eye_s, params["conv_w"][l])
        a_layers.append((a_spec + a_conv).reshape(S * W, S * W))
        b_layers.append(jnp.broadcast_to(params["conv_b"][l], (S, W)).reshape(S * W))

    # Fold fc1 (block-diagonal over spatial) into the LAST Fourier layer: the
    # module applies no activation between them.
    p1 = jnp.kron(eye_s, params["fc1_w"].T)                       # (S*W, S*FC)
    a_last = a_layers[-1] @ p1
    b_last = (b_layers[-1] @ p1
              + jnp.broadcast_to(params["fc1_b"], (S, FC)).reshape(S * FC))

    w2 = jnp.kron(eye_s, params["fc2_w"].T)                       # (S*FC, S*out)
    b2 = jnp.broadcast_to(params["fc2_b"], (S, out_dim)).reshape(S * out_dim)

    a012 = jnp.stack(a_layers[:-1]).astype(jnp.bfloat16)          # (L-1, S*W, S*W)
    ab012 = jnp.stack(b_layers[:-1]).reshape(L - 1, 1, S * W)     # f32
    return (a012, ab012,
            a_last.astype(jnp.bfloat16), b_last.reshape(1, S * FC),
            w2.astype(jnp.bfloat16), b2.reshape(1, S * out_dim))


def _pick_batch_tile(B, target_rows=256):
    """Largest multiple-of-8 divisor of B that is <= min(target_rows, B//2).

    Keeps >= 2 grid steps (v7x: two TensorCores share the 'parallel' grid
    axis) and sublane-aligned tiles; falls back to a single full-batch step
    when B is small or has no suitable divisor (avoids degenerate TB=1 tiles).
    """
    cap = min(target_rows, B // 2)
    best, t = 0, 8
    while t <= cap:
        if B % t == 0:
            best = t
        t += 8
    return best if best else B


# ----------------------------------------------------------------------------
# Wrapper: layout glue + pallas_call.
# ----------------------------------------------------------------------------
def fno1d_pallas(x, params, modes, batch_tile=None):
    B, S, in_dim = x.shape
    L, W, W2, M = params["sp_wr"].shape
    out_dim = params["fc2_w"].shape[0]
    FC = params["fc1_w"].shape[0]
    assert modes[0] == M and W == W2 and L >= 2

    TB = batch_tile if batch_tile is not None else _pick_batch_tile(B)
    assert B % TB == 0, (B, TB)
    nb = B // TB

    # fc0 lift hoisted to XLA (K=2 is a degenerate MXU shape and a lane-sparse
    # input block); kernel input is a lane-dense (TB, S*W) bf16 block.
    h0 = (x @ params["fc0_w"].T + params["fc0_b"]).reshape(B, S * W)
    h0 = h0.astype(jnp.bfloat16)

    a012, ab012, a3, b3, w2, b2 = _build_operators(params, S)

    def _const_spec(a):
        nd = a.ndim
        return pl.BlockSpec(a.shape, lambda b, _nd=nd: (0,) * _nd)

    in_specs = [pl.BlockSpec((TB, S * W), lambda b: (b, 0))]
    in_specs += [_const_spec(a) for a in (a012, ab012, a3, b3, w2, b2)]

    out = pl.pallas_call(
        fno1d_kernel,
        out_shape=jax.ShapeDtypeStruct((B, S * out_dim), jnp.float32),
        grid=(nb,),
        in_specs=in_specs,
        out_specs=pl.BlockSpec((TB, S * out_dim), lambda b: (b, 0)),
        compiler_params=pltpu.CompilerParams(
            dimension_semantics=("parallel",),
            vmem_limit_bytes=32 * 1024 * 1024,
        ),
    )(h0, a012, ab012, a3, b3, w2, b2)

    return out.reshape(B, S, out_dim)


# ----------------------------------------------------------------------------
# Pure-JAX reference (real FFTs) mirroring the PyTorch forward exactly.
# ----------------------------------------------------------------------------
def fno1d_reference(x, params):
    B, S, _ = x.shape
    L, Ci, Co, M = params["sp_wr"].shape
    h = x @ params["fc0_w"].T + params["fc0_b"]                   # (B, S, W)
    h = jnp.transpose(h, (0, 2, 1))                               # (B, W, S)
    for l in range(L):
        x_ft = jnp.fft.rfft(h, axis=-1)                           # (B, Ci, S//2+1)
        w = params["sp_wr"][l] + 1j * params["sp_wi"][l]          # (Ci, Co, M)
        y_ft = jnp.einsum("bix,iox->box", x_ft[:, :, :M], w)
        out_ft = jnp.zeros((B, Co, S // 2 + 1), dtype=y_ft.dtype)
        out_ft = out_ft.at[:, :, :M].set(y_ft)
        x1 = jnp.fft.irfft(out_ft, n=S, axis=-1)
        x2 = (jnp.einsum("oc,bcs->bos", params["conv_w"][l], h)
              + params["conv_b"][l][None, :, None])
        h = x1 + x2
        if l != L - 1:
            h = jnp.maximum(h, 0.0)
    h = jnp.transpose(h, (0, 2, 1))                               # (B, S, W)
    h = jnp.maximum(h @ params["fc1_w"].T + params["fc1_b"], 0.0)
    return h @ params["fc2_w"].T + params["fc2_b"]


# ----------------------------------------------------------------------------
# Deterministic parameter construction (shapes match the nn.Module __init__).
# ----------------------------------------------------------------------------
def make_params(key, modes, width, fc_dim, in_dim, out_dim):
    layers = [width] * 5
    L = len(layers) - 1
    keys = jax.random.split(key, 16)
    scale = 1.0 / (width * width)
    return {
        "fc0_w": 0.1 * jax.random.normal(keys[0], (layers[0], in_dim), jnp.float32),
        "fc0_b": 0.1 * jax.random.normal(keys[1], (layers[0],), jnp.float32),
        # SpectralConv1d complex weights: (in, out, modes) real & imag parts.
        "sp_wr": scale * jax.random.uniform(keys[2], (L, width, width, modes[0]),
                                            jnp.float32),
        "sp_wi": scale * jax.random.uniform(keys[3], (L, width, width, modes[0]),
                                            jnp.float32),
        # Conv1d(in, out, 1) weights (out, in) and biases.
        "conv_w": 0.1 * jax.random.normal(keys[4], (L, width, width), jnp.float32),
        "conv_b": 0.1 * jax.random.normal(keys[5], (L, width), jnp.float32),
        "fc1_w": 0.1 * jax.random.normal(keys[6], (fc_dim, layers[-1]), jnp.float32),
        "fc1_b": 0.1 * jax.random.normal(keys[7], (fc_dim,), jnp.float32),
        "fc2_w": 0.1 * jax.random.normal(keys[8], (out_dim, fc_dim), jnp.float32),
        "fc2_b": 0.1 * jax.random.normal(keys[9], (out_dim,), jnp.float32),
    }


if __name__ == "__main__":
    # Input is (a(x), x) -> (batch, s, in_dim=2).  B=64 with the batch-tile
    # heuristic gives TB=32, grid=(2,) (both TensorCores busy on v7x), and
    # per-step matmuls of shape (32, 256) x (256, 256/512).
    B, S = 64, 16
    width, fc_dim, in_dim, out_dim = 16, 32, 2, 1
    modes = [8, 8, 8, 8]                       # one entry per Fourier layer

    key = jax.random.PRNGKey(0)
    kx, kp = jax.random.split(key)
    x = jax.random.normal(kx, (B, S, in_dim), jnp.float32)
    params = make_params(kp, modes, width, fc_dim, in_dim, out_dim)

    out = fno1d_pallas(x, params, modes)
    out = jax.block_until_ready(out)

    ref = jax.block_until_ready(fno1d_reference(x, params))
    assert out.shape == (B, S, out_dim), out.shape
    # bf16 operator storage + default (bf16-pass) MXU precision vs. f32 FFT
    # reference: tolerance accordingly loose.
    np.testing.assert_allclose(np.asarray(out), np.asarray(ref),
                               rtol=2e-2, atol=2e-2)
    print("KERNEL_OK")
</pallas_src>

<mosaic_0001>
module attributes {stable_mosaic.version = 11 : i64} {
  func.func @fno1d_kernel(%arg0: i32, %arg1: memref<32x256xbf16, #tpu.memory_space<vmem>>, %arg2: memref<3x256x256xbf16, #tpu.memory_space<vmem>>, %arg3: memref<3x1x256xf32, #tpu.memory_space<vmem>>, %arg4: memref<256x512xbf16, #tpu.memory_space<vmem>>, %arg5: memref<1x512xf32, #tpu.memory_space<vmem>>, %arg6: memref<512x16xbf16, #tpu.memory_space<vmem>>, %arg7: memref<1x16xf32, #tpu.memory_space<vmem>>, %arg8: memref<32x16xf32, #tpu.memory_space<vmem>>) attributes {dimension_semantics = [#tpu.dimension_semantics<parallel>], iteration_bounds = array<i64: 2>, scalar_prefetch = 0 : i64, scratch_operands = 0 : i64, tpu.core_type = #tpu.core_type<tc>, window_params = [{transform_indices = @transform_0, window_bounds = array<i64: 32, 256>}, {pipeline_mode = #tpu.pipeline_mode<synchronous>, transform_indices = @transform_1, window_bounds = array<i64: 3, 256, 256>}, {pipeline_mode = #tpu.pipeline_mode<synchronous>, transform_indices = @transform_2, window_bounds = array<i64: 3, 1, 256>}, {pipeline_mode = #tpu.pipeline_mode<synchronous>, transform_indices = @transform_3, window_bounds = array<i64: 256, 512>}, {pipeline_mode = #tpu.pipeline_mode<synchronous>, transform_indices = @transform_4, window_bounds = array<i64: 1, 512>}, {pipeline_mode = #tpu.pipeline_mode<synchronous>, transform_indices = @transform_5, window_bounds = array<i64: 512, 16>}, {pipeline_mode = #tpu.pipeline_mode<synchronous>, transform_indices = @transform_6, window_bounds = array<i64: 1, 16>}, {transform_indices = @transform_7, window_bounds = array<i64: 32, 16>}]} {
    %c0 = arith.constant 0 : index
    %c0_0 = arith.constant 0 : index
    %0 = vector.load %arg1[%c0, %c0_0] : memref<32x256xbf16, #tpu.memory_space<vmem>>, vector<32x256xbf16>
    %c0_1 = arith.constant 0 : index
    %c0_2 = arith.constant 0 : index
    %c0_3 = arith.constant 0 : index
    %1 = vector.load %arg2[%c0_1, %c0_2, %c0_3] : memref<3x256x256xbf16, #tpu.memory_space<vmem>>, vector<1x256x256xbf16>
    %2 = vector.shape_cast %1 : vector<1x256x256xbf16> to vector<256x256xbf16>
    %cst = arith.constant dense<0.000000e+00> : vector<32x256xf32>
    %3 = tpu.matmul %0, %2, %cst {dimension_numbers = #tpu.dot_dimension_numbers<[1], [0], [0], [1], [0, 0, 1, 1], [], []>} : vector<32x256xbf16>, vector<256x256xbf16>, vector<32x256xf32> -> vector<32x256xf32>
    %c0_4 = arith.constant 0 : index
    %c0_5 = arith.constant 0 : index
    %c0_6 = arith.constant 0 : index
    %4 = vector.load %arg3[%c0_4, %c0_5, %c0_6] : memref<3x1x256xf32, #tpu.memory_space<vmem>>, vector<1x1x256xf32>
    %5 = vector.shape_cast %4 : vector<1x1x256xf32> to vector<1x256xf32>
    %6 = vector.broadcast %5 : vector<1x256xf32> to vector<32x256xf32>
    %7 = arith.addf %3, %6 : vector<32x256xf32>
    %cst_7 = arith.constant 0.000000e+00 : f32
    %8 = vector.broadcast %cst_7 : f32 to vector<32x256xf32>
    %9 = arith.maximumf %7, %8 : vector<32x256xf32>
    %10 = arith.truncf %9 : vector<32x256xf32> to vector<32x256xbf16>
    %c1 = arith.constant 1 : index
    %c0_8 = arith.constant 0 : index
    %c0_9 = arith.constant 0 : index
    %11 = vector.load %arg2[%c1, %c0_8, %c0_9] : memref<3x256x256xbf16, #tpu.memory_space<vmem>>, vector<1x256x256xbf16>
    %12 = vector.shape_cast %11 : vector<1x256x256xbf16> to vector<256x256xbf16>
    %cst_10 = arith.constant dense<0.000000e+00> : vector<32x256xf32>
    %13 = tpu.matmul %10, %12, %cst_10 {dimension_numbers = #tpu.dot_dimension_numbers<[1], [0], [0], [1], [0, 0, 1, 1], [], []>} : vector<32x256xbf16>, vector<256x256xbf16>, vector<32x256xf32> -> vector<32x256xf32>
    %c1_11 = arith.constant 1 : index
    %c0_12 = arith.constant 0 : index
    %c0_13 = arith.constant 0 : index
    %14 = vector.load %arg3[%c1_11, %c0_12, %c0_13] : memref<3x1x256xf32, #tpu.memory_space<vmem>>, vector<1x1x256xf32>
    %15 = vector.shape_cast %14 : vector<1x1x256xf32> to vector<1x256xf32>
    %16 = vector.broadcast %15 : vector<1x256xf32> to vector<32x256xf32>
    %17 = arith.addf %13, %16 : vector<32x256xf32>
    %cst_14 = arith.constant 0.000000e+00 : f32
    %18 = vector.broadcast %cst_14 : f32 to vector<32x256xf32>
    %19 = arith.maximumf %17, %18 : vector<32x256xf32>
    %20 = arith.truncf %19 : vector<32x256xf32> to vector<32x256xbf16>
    %c2 = arith.constant 2 : index
    %c0_15 = arith.constant 0 : index
    %c0_16 = arith.constant 0 : index
    %21 = vector.load %arg2[%c2, %c0_15, %c0_16] : memref<3x256x256xbf16, #tpu.memory_space<vmem>>, vector<1x256x256xbf16>
    %22 = vector.shape_cast %21 : vector<1x256x256xbf16> to vector<256x256xbf16>
    %cst_17 = arith.constant dense<0.000000e+00> : vector<32x256xf32>
    %23 = tpu.matmul %20, %22, %cst_17 {dimension_numbers = #tpu.dot_dimension_numbers<[1], [0], [0], [1], [0, 0, 1, 1], [], []>} : vector<32x256xbf16>, vector<256x256xbf16>, vector<32x256xf32> -> vector<32x256xf32>
    %c2_18 = arith.constant 2 : index
    %c0_19 = arith.constant 0 : index
    %c0_20 = arith.constant 0 : index
    %24 = vector.load %arg3[%c2_18, %c0_19, %c0_20] : memref<3x1x256xf32, #tpu.memory_space<vmem>>, vector<1x1x256xf32>
    %25 = vector.shape_cast %24 : vector<1x1x256xf32> to vector<1x256xf32>
    %26 = vector.broadcast %25 : vector<1x256xf32> to vector<32x256xf32>
    %27 = arith.addf %23, %26 : vector<32x256xf32>
    %cst_21 = arith.constant 0.000000e+00 : f32
    %28 = vector.broadcast %cst_21 : f32 to vector<32x256xf32>
    %29 = arith.maximumf %27, %28 : vector<32x256xf32>
    %30 = arith.truncf %29 : vector<32x256xf32> to vector<32x256xbf16>
    %c0_22 = arith.constant 0 : index
    %c0_23 = arith.constant 0 : index
    %31 = vector.load %arg4[%c0_22, %c0_23] : memref<256x512xbf16, #tpu.memory_space<vmem>>, vector<256x512xbf16>
    %cst_24 = arith.constant dense<0.000000e+00> : vector<32x512xf32>
    %32 = tpu.matmul %30, %31, %cst_24 {dimension_numbers = #tpu.dot_dimension_numbers<[1], [0], [0], [1], [0, 0, 1, 1], [], []>} : vector<32x256xbf16>, vector<256x512xbf16>, vector<32x512xf32> -> vector<32x512xf32>
    %c0_25 = arith.constant 0 : index
    %c0_26 = arith.constant 0 : index
    %33 = vector.load %arg5[%c0_25, %c0_26] : memref<1x512xf32, #tpu.memory_space<vmem>>, vector<1x512xf32>
    %34 = vector.broadcast %33 : vector<1x512xf32> to vector<32x512xf32>
    %35 = arith.addf %32, %34 : vector<32x512xf32>
    %cst_27 = arith.constant 0.000000e+00 : f32
    %36 = vector.broadcast %cst_27 : f32 to vector<32x512xf32>
    %37 = arith.maximumf %35, %36 : vector<32x512xf32>
    %38 = arith.truncf %37 : vector<32x512xf32> to vector<32x512xbf16>
    %c0_28 = arith.constant 0 : index
    %c0_29 = arith.constant 0 : index
    %39 = vector.load %arg6[%c0_28, %c0_29] : memref<512x16xbf16, #tpu.memory_space<vmem>>, vector<512x16xbf16>
    %cst_30 = arith.constant dense<0.000000e+00> : vector<32x16xf32>
    %40 = tpu.matmul %38, %39, %cst_30 {dimension_numbers = #tpu.dot_dimension_numbers<[1], [0], [0], [1], [0, 0, 1, 1], [], []>} : vector<32x512xbf16>, vector<512x16xbf16>, vector<32x16xf32> -> vector<32x16xf32>
    %c0_31 = arith.constant 0 : index
    %c0_32 = arith.constant 0 : index
    %41 = vector.load %arg7[%c0_31, %c0_32] : memref<1x16xf32, #tpu.memory_space<vmem>>, vector<1x16xf32>
    %42 = vector.broadcast %41 : vector<1x16xf32> to vector<32x16xf32>
    %43 = arith.addf %40, %42 : vector<32x16xf32>
    %c0_33 = arith.constant 0 : index
    %c0_34 = arith.constant 0 : index
    %44 = vector.load %arg8[%c0_33, %c0_34] : memref<32x16xf32, #tpu.memory_space<vmem>>, vector<32x16xf32>
    tpu.vector_store %arg8[%c0_33, %c0_34], %43 {strides = array<i32>} : memref<32x16xf32, #tpu.memory_space<vmem>>, vector<32x16xf32>,
    return
  }
  func.func @transform_0(%arg0: i32) -> (i32, i32) {
    %c0_i32 = arith.constant 0 : i32
    %c0_i32_0 = arith.constant 0 : i32
    return %arg0, %c0_i32 : i32, i32
  }
  func.func @transform_1(%arg0: i32) -> (i32, i32, i32) {
    %c0_i32 = arith.constant 0 : i32
    %c0_i32_0 = arith.constant 0 : i32
    %c0_i32_1 = arith.constant 0 : i32
    %c0_i32_2 = arith.constant 0 : i32
    return %c0_i32, %c0_i32_0, %c0_i32_1 : i32, i32, i32
  }
  func.func @transform_2(%arg0: i32) -> (i32, i32, i32) {
    %c0_i32 = arith.constant 0 : i32
    %c0_i32_0 = arith.constant 0 : i32
    %c0_i32_1 = arith.constant 0 : i32
    %c0_i32_2 = arith.constant 0 : i32
    return %c0_i32, %c0_i32_0, %c0_i32_1 : i32, i32, i32
  }
  func.func @transform_3(%arg0: i32) -> (i32, i32) {
    %c0_i32 = arith.constant 0 : i32
    %c0_i32_0 = arith.constant 0 : i32
    %c0_i32_1 = arith.constant 0 : i32
    return %c0_i32, %c0_i32_0 : i32, i32
  }
  func.func @transform_4(%arg0: i32) -> (i32, i32) {
    %c0_i32 = arith.constant 0 : i32
    %c0_i32_0 = arith.constant 0 : i32
    %c0_i32_1 = arith.constant 0 : i32
    return %c0_i32, %c0_i32_0 : i32, i32
  }
  func.func @transform_5(%arg0: i32) -> (i32, i32) {
    %c0_i32 = arith.constant 0 : i32
    %c0_i32_0 = arith.constant 0 : i32
    %c0_i32_1 = arith.constant 0 : i32
    return %c0_i32, %c0_i32_0 : i32, i32
  }
  func.func @transform_6(%arg0: i32) -> (i32, i32) {
    %c0_i32 = arith.constant 0 : i32
    %c0_i32_0 = arith.constant 0 : i32
    %c0_i32_1 = arith.constant 0 : i32
    return %c0_i32, %c0_i32_0 : i32, i32
  }
  func.func @transform_7(%arg0: i32) -> (i32, i32) {
    %c0_i32 = arith.constant 0 : i32
    %c0_i32_0 = arith.constant 0 : i32
    return %arg0, %c0_i32 : i32, i32
  }
}

</mosaic_0001>

<llo_original>
// kernel: tpu_custom_call.1
$region0: #{tpu_custom_call.1}
  #allocation0 [shape = 'u32[]', space=smem, size = 0x4, offset = 0x4, fixed_abs, tag = 'smem constant byte address 0x4 - core index']
  #allocation1 [shape = 'u32[144,128]{1,0:T(1,128)}', space=vmem, size = 0x12000, scoped, tag = 'internal scratch']
  %s0 = inlined_call_operand.vmem [shape: bf16[64,256], index: 0, kind: input, shape index: {}]
  %s1 = inlined_call_operand.hbm [shape: bf16[3,256,256], index: 1, kind: input, shape index: {}]
  %s2 = inlined_call_operand.vmem [shape: f32[3,1,256], index: 2, kind: input, shape index: {}]
  %s3 = inlined_call_operand.hbm [shape: bf16[256,512], index: 3, kind: input, shape index: {}]
  %s4 = inlined_call_operand.vmem [shape: f32[1,512], index: 4, kind: input, shape index: {}]
  %s5 = inlined_call_operand.vmem [shape: bf16[512,16], index: 5, kind: input, shape index: {}]
  %s6 = inlined_call_operand.vmem [shape: f32[1,16], index: 6, kind: input, shape index: {}]
  %s7 = inlined_call_operand.vmem [shape: f32[64,16], index: 7, kind: output, shape index: {}]
  %s8 = sld [smem:[#allocation0]]
  $region69: #{tpu_custom_call.1} parent=0
    _
  %s10 = ssub.s32 1, %s8
  %s11 = scalar_select 0, %s10, %s8
  $region1: #{tpu_custom_call.1} parent=0
    #allocation2 [shape = 'u8[393216]{0}', space=vmem, size = 0x60000, scoped, tag = 'input window, operand 1, single buffered']
    #allocation3 [shape = 's32[2]{0}', space=sflag, size = 0x8, scoped, tag = 'scoped memory for tpu_custom_call.1']
    #allocation4 [shape = 'u8[262144]{0}', space=vmem, size = 0x40000, scoped, tag = 'input window, operand 3, single buffered']
    #allocation5 [shape = 's32[1]{0}', space=sflag, size = 0x4, scoped, tag = 'scoped memory for tpu_custom_call.1']
    %12 = vsyncpa [#allocation3], 0
    %13 = vsyncpa [#allocation5], 0
    loop: start=0, step=1, limit=4
    $region2: #{tpu_custom_call.1} parent=1 // loop_pre_header
      _
    $region3: #{tpu_custom_call.1} parent=1 // loop_header
      %s15 = sphi 0, %s19
      %p16 = scmp.ge.s32.totalorder %s15, 4
      %s25 = sphi 0, %s27
      %s28 = sphi 0, %s25
      %s29 = sphi 0, %s28
      %s45 = sphi 0, %s29
      %s49 = sphi 0, %s49
      %s51 = sphi 0, %s49
      %s52 = sphi 0, %s51
      %s66 = sphi 0, %s52
      %s70 = sphi 0, %s70
      %s72 = sphi 0, %s70
      %s73 = sphi 0, %s72
      %s87 = sphi 0, %s73
      %s91 = sphi 0, %s91
      %s93 = sphi 0, %s91
      %s94 = sphi 0, %s93
      %s108 = sphi 0, %s94
      %s112 = sphi 0, %s112
      %s114 = sphi 0, %s112
      %s115 = sphi 0, %s114
      %s129 = sphi 0, %s115
      %s133 = sphi 0, %s133
      %s135 = sphi 0, %s133
      %s136 = sphi 0, %s135
      %s150 = sphi 0, %s136
      %s154 = sphi 0, %s154
      %s156 = sphi 0, %s154
      %s157 = sphi 0, %s156
      %s171 = sphi 0, %s157
      %s177 = sphi 0, %s179
      %s180 = sphi 0, %s177
      %s181 = sphi 0, %s180
      %s197 = sphi 0, %s181
    $region4: #{tpu_custom_call.1} parent=1 // loop_header_branch
      %18 = sbr.rel (%p16) target = $region8
    $region5: #{tpu_custom_call.1} parent=1 // loop_body
      %s20 = ssub.s32 %s15, 1
      %s21 = ssub.s32 %s15, 2
      %s22 = sadd.s32 %s15, 1
      %s23 = ssub.s32 %s15, %s22
      %p24 = scmp.eq.s32.totalorder %s23, 0
      %s26 = sadd.s32 %s25, 1
      %s27 = scalar_select %p24, %s25, %s26
      %p30 = pneg %p24
      %p31 = scmp.eq.s32.totalorder %s15, 1
      %p32 = por %p30, %p31
      %p33 = scmp.ne.s32.totalorder %s25, %s28
      %p34 = scmp.eq.s32.totalorder %s15, 0
      %p35 = por %p33, %p34
      %p36 = scmp.ne.s32.totalorder %s25, %s28
      %p37 = scmp.eq.s32.totalorder %s20, 1
      %p38 = por %p36, %p37
      %p39 = scmp.ne.s32.totalorder %s28, %s29
      %p40 = scmp.eq.s32.totalorder %s20, 0
      %p41 = por %p39, %p40
      %p42 = scmp.ne.s32.totalorder %s28, %s29
      %p43 = scmp.eq.s32.totalorder %s21, 1
      %p44 = por %p42, %p43
      %p46 = scmp.ne.s32.totalorder %s29, %s45
      %p47 = scmp.eq.s32.totalorder %s21, 0
      %p48 = por %p46, %p47
      %s50 = sadd.s32 %s49, 1
      %p53 = scmp.eq.s32.totalorder %s15, 1
      %p54 = scmp.ne.s32.totalorder %s49, %s51
      %p55 = scmp.eq.s32.totalorder %s15, 0
      %p56 = por %p54, %p55
      %p57 = scmp.ne.s32.totalorder %s49, %s51
      %p58 = scmp.eq.s32.totalorder %s20, 1
      %p59 = por %p57, %p58
      %p60 = scmp.ne.s32.totalorder %s51, %s52
      %p61 = scmp.eq.s32.totalorder %s20, 0
      %p62 = por %p60, %p61
      %p63 = scmp.ne.s32.totalorder %s51, %s52
      %p64 = scmp.eq.s32.totalorder %s21, 1
      %p65 = por %p63, %p64
      %p67 = scmp.ne.s32.totalorder %s52, %s66
      %p68 = scmp.eq.s32.totalorder %s21, 0
      %p69 = por %p67, %p68
      %s71 = sadd.s32 %s70, 1
      %p74 = scmp.eq.s32.totalorder %s15, 1
      %p75 = scmp.ne.s32.totalorder %s70, %s72
      %p76 = scmp.eq.s32.totalorder %s15, 0
      %p77 = por %p75, %p76
      %p78 = scmp.ne.s32.totalorder %s70, %s72
      %p79 = scmp.eq.s32.totalorder %s20, 1
      %p80 = por %p78, %p79
      %p81 = scmp.ne.s32.totalorder %s72, %s73
      %p82 = scmp.eq.s32.totalorder %s20, 0
      %p83 = por %p81, %p82
      %p84 = scmp.ne.s32.totalorder %s72, %s73
      %p85 = scmp.eq.s32.totalorder %s21, 1
      %p86 = por %p84, %p85
      %p88 = scmp.ne.s32.totalorder %s73, %s87
      %p89 = scmp.eq.s32.totalorder %s21, 0
      %p90 = por %p88, %p89
      %s92 = sadd.s32 %s91, 1
      %p95 = scmp.eq.s32.totalorder %s15, 1
      %p96 = scmp.ne.s32.totalorder %s91, %s93
      %p97 = scmp.eq.s32.totalorder %s15, 0
      %p98 = por %p96, %p97
      %p99 = scmp.ne.s32.totalorder %s91, %s93
      %p100 = scmp.eq.s32.totalorder %s20, 1
      %p101 = por %p99, %p100
      %p102 = scmp.ne.s32.totalorder %s93, %s94
      %p103 = scmp.eq.s32.totalorder %s20, 0
      %p104 = por %p102, %p103
      %p105 = scmp.ne.s32.totalorder %s93, %s94
      %p106 = scmp.eq.s32.totalorder %s21, 1
      %p107 = por %p105, %p106
      %p109 = scmp.ne.s32.totalorder %s94, %s108
      %p110 = scmp.eq.s32.totalorder %s21, 0
      %p111 = por %p109, %p110
      %s113 = sadd.s32 %s112, 1
      %p116 = scmp.eq.s32.totalorder %s15, 1
      %p117 = scmp.ne.s32.totalorder %s112, %s114
      %p118 = scmp.eq.s32.totalorder %s15, 0
      %p119 = por %p117, %p118
      %p120 = scmp.ne.s32.totalorder %s112, %s114
      %p121 = scmp.eq.s32.totalorder %s20, 1
      %p122 = por %p120, %p121
      %p123 = scmp.ne.s32.totalorder %s114, %s115
      %p124 = scmp.eq.s32.totalorder %s20, 0
      %p125 = por %p123, %p124
      %p126 = scmp.ne.s32.totalorder %s114, %s115
      %p127 = scmp.eq.s32.totalorder %s21, 1
      %p128 = por %p126, %p127
      %p130 = scmp.ne.s32.totalorder %s115, %s129
      %p131 = scmp.eq.s32.totalorder %s21, 0
      %p132 = por %p130, %p131
      %s134 = sadd.s32 %s133, 1
      %p137 = scmp.eq.s32.totalorder %s15, 1
      %p138 = scmp.ne.s32.totalorder %s133, %s135
      %p139 = scmp.eq.s32.totalorder %s15, 0
      %p140 = por %p138, %p139
      %p141 = scmp.ne.s32.totalorder %s133, %s135
      %p142 = scmp.eq.s32.totalorder %s20, 1
      %p143 = por %p141, %p142
      %p144 = scmp.ne.s32.totalorder %s135, %s136
      %p145 = scmp.eq.s32.totalorder %s20, 0
      %p146 = por %p144, %p145
      %p147 = scmp.ne.s32.totalorder %s135, %s136
      %p148 = scmp.eq.s32.totalorder %s21, 1
      %p149 = por %p147, %p148
      %p151 = scmp.ne.s32.totalorder %s136, %s150
      %p152 = scmp.eq.s32.totalorder %s21, 0
      %p153 = por %p151, %p152
      %s155 = sadd.s32 %s154, 1
      %p158 = scmp.eq.s32.totalorder %s15, 1
      %p159 = scmp.ne.s32.totalorder %s154, %s156
      %p160 = scmp.eq.s32.totalorder %s15, 0
      %p161 = por %p159, %p160
      %p162 = scmp.ne.s32.totalorder %s154, %s156
      %p163 = scmp.eq.s32.totalorder %s20, 1
      %p164 = por %p162, %p163
      %p165 = scmp.ne.s32.totalorder %s156, %s157
      %p166 = scmp.eq.s32.totalorder %s20, 0
      %p167 = por %p165, %p166
      %p168 = scmp.ne.s32.totalorder %s156, %s157
      %p169 = scmp.eq.s32.totalorder %s21, 1
      %p170 = por %p168, %p169
      %p172 = scmp.ne.s32.totalorder %s157, %s171
      %p173 = scmp.eq.s32.totalorder %s21, 0
      %p174 = por %p172, %p173
      %s175 = ssub.s32 %s15, %s22
      %p176 = scmp.eq.s32.totalorder %s175, 0
      %s178 = sadd.s32 %s177, 1
      %s179 = scalar_select %p176, %s177, %s178
      %p182 = pneg %p176
      %p183 = scmp.eq.s32.totalorder %s15, 1
      %p184 = por %p182, %p183
      %p185 = scmp.ne.s32.totalorder %s177, %s180
      %p186 = scmp.eq.s32.totalorder %s15, 0
      %p187 = por %p185, %p186
      %p188 = scmp.ne.s32.totalorder %s177, %s180
      %p189 = scmp.eq.s32.totalorder %s20, 1
      %p190 = por %p188, %p189
      %p191 = scmp.ne.s32.totalorder %s180, %s181
      %p192 = scmp.eq.s32.totalorder %s20, 0
      %p193 = por %p191, %p192
      %p194 = scmp.ne.s32.totalorder %s180, %s181
      %p195 = scmp.eq.s32.totalorder %s21, 1
      %p196 = por %p194, %p195
      %p198 = scmp.ne.s32.totalorder %s181, %s197
      %p199 = scmp.eq.s32.totalorder %s21, 0
      %p200 = por %p198, %p199
      %p201 = scmp.le.s32.totalorder 1, %s15
      %p202 = scmp.lt.s32.totalorder %s15, 3
      %p203 = pnand %p201, %p202
      %p204 = pneg %p203
      // Predicated region
      $region9: #{tpu_custom_call.1} parent=5 // pred_check
        _
      $region10: #{tpu_custom_call.1} parent=5 // pred_check_branch
        %206 = sbr.rel (%p203) target = $region12
      $region11: #{tpu_custom_call.1} parent=5 // pred_region
        %s207 = ssub.s32 %s15, 1
        // Predicated region
        $region13: #{tpu_custom_call.1} parent=11 // pred_check
          %p208 = pneg %p62
        $region14: #{tpu_custom_call.1} parent=11 // pred_check_branch
          %210 = sbr.rel (%p208) target = $region16
        $region15: #{tpu_custom_call.1} parent=11 // pred_region
          %s212 = ssub.s32 12288, 12288
          %213 = vsyncadd [#allocation3], %s212
          %s214 = sshll.u32 [#allocation2], 4
          %s215 = int_to_ptr.vmem [resolvable:$true] %s214
          %220 = dma.hbm_to_vmem [thread:$0]  %s1, 12288, %s215, [#allocation3], 128, 128, 8
        $region16: #{tpu_custom_call.1} parent=11 // pred_fallthru
          _
        // Predicated region
        $region17: #{tpu_custom_call.1} parent=11 // pred_check
          %p221 = pneg %p83
        $region18: #{tpu_custom_call.1} parent=11 // pred_check_branch
          %223 = sbr.rel (%p221) target = $region20
        $region19: #{tpu_custom_call.1} parent=11 // pred_region
          _
        $region20: #{tpu_custom_call.1} parent=11 // pred_fallthru
          _
        // Predicated region
        $region21: #{tpu_custom_call.1} parent=11 // pred_check
          %p224 = pneg %p104
        $region22: #{tpu_custom_call.1} parent=11 // pred_check_branch
          %226 = sbr.rel (%p224) target = $region24
        $region23: #{tpu_custom_call.1} parent=11 // pred_region
          %s228 = ssub.s32 8192, 8192
          %229 = vsyncadd [#allocation5], %s228
          %s230 = sshll.u32 [#allocation4], 4
          %s231 = int_to_ptr.vmem [resolvable:$true] %s230
          %236 = dma.hbm_to_vmem [thread:$0]  %s3, 8192, %s231, [#allocation5], 256, 256, 16
        $region24: #{tpu_custom_call.1} parent=11 // pred_fallthru
          _
        // Predicated region
        $region25: #{tpu_custom_call.1} parent=11 // pred_check
          %p237 = pneg %p125
        $region26: #{tpu_custom_call.1} parent=11 // pred_check_branch
          %239 = sbr.rel (%p237) target = $region28
        $region27: #{tpu_custom_call.1} parent=11 // pred_region
          _
        $region28: #{tpu_custom_call.1} parent=11 // pred_fallthru
          _
        // Predicated region
        $region29: #{tpu_custom_call.1} parent=11 // pred_check
          %p240 = pneg %p146
        $region30: #{tpu_custom_call.1} parent=11 // pred_check_branch
          %242 = sbr.rel (%p240) target = $region32
        $region31: #{tpu_custom_call.1} parent=11 // pred_region
          _
        $region32: #{tpu_custom_call.1} parent=11 // pred_fallthru
          _
        // Predicated region
        $region33: #{tpu_custom_call.1} parent=11 // pred_check
          %p243 = pneg %p167
        $region34: #{tpu_custom_call.1} parent=11 // pred_check_branch
          %245 = sbr.rel (%p243) target = $region36
        $region35: #{tpu_custom_call.1} parent=11 // pred_region
          _
        $region36: #{tpu_custom_call.1} parent=11 // pred_fallthru
          _
      $region12: #{tpu_custom_call.1} parent=5 // pred_fallthru
        _
      %p246 = scmp.lt.s32.totalorder %s15, 2
      // Predicated region
      $region37: #{tpu_custom_call.1} parent=5 // pred_check
        %p247 = pneg %p246
      $region38: #{tpu_custom_call.1} parent=5 // pred_check_branch
        %249 = sbr.rel (%p247) target = $region40
      $region39: #{tpu_custom_call.1} parent=5 // pred_region
        // Predicated region
        $region41: #{tpu_custom_call.1} parent=39 // pred_check
          %p250 = pneg %p35
        $region42: #{tpu_custom_call.1} parent=39 // pred_check_branch
          %252 = sbr.rel (%p250) target = $region44
        $region43: #{tpu_custom_call.1} parent=39 // pred_region
          %s253 = smul.u32 4, %s15
          %p254 = scmp.lt.s32.totalorder %s253, 7
          %s255 = scalar_select %p254, %s253, 7
          %s256 = smul.addr %s255, 2
          %s257 = smul.addr %s256, 4
          %s258 = scalar_lea.vmem %s0, %s257
          %s259 = smul.u32 4, %s15
        $region44: #{tpu_custom_call.1} parent=39 // pred_fallthru
          _
      $region40: #{tpu_custom_call.1} parent=5 // pred_fallthru
        _
      %p260 = scmp.le.s32.totalorder 1, %s15
      %p261 = scmp.lt.s32.totalorder %s15, 3
      %p262 = pnand %p260, %p261
      %p263 = pneg %p262
      // Predicated region
      $region45: #{tpu_custom_call.1} parent=5 // pred_check
        _
      $region46: #{tpu_custom_call.1} parent=5 // pred_check_branch
        %265 = sbr.rel (%p262) target = $region48
      $region47: #{tpu_custom_call.1} parent=5 // pred_region
        %s266 = ssub.s32 %s15, 1
        // Predicated region
        $region49: #{tpu_custom_call.1} parent=47 // pred_check
          %p267 = pneg %p62
        $region50: #{tpu_custom_call.1} parent=47 // pred_check_branch
          %269 = sbr.rel (%p267) target = $region52
        $region51: #{tpu_custom_call.1} parent=47 // pred_region
          %270 = dma.done [#allocation3], 12288
        $region52: #{tpu_custom_call.1} parent=47 // pred_fallthru
          _
        // Predicated region
        $region53: #{tpu_custom_call.1} parent=47 // pred_check
          %p271 = pneg %p104
        $region54: #{tpu_custom_call.1} parent=47 // pred_check_branch
          %273 = sbr.rel (%p271) target = $region56
        $region55: #{tpu_custom_call.1} parent=47 // pred_region
          %274 = dma.done [#allocation5], 8192
        $region56: #{tpu_custom_call.1} parent=47 // pred_fallthru
          _
        %s275 = smul.u32 4, %s20
        %p276 = scmp.lt.s32.totalorder %s275, 7
        %s277 = scalar_select %p276, %s275, 7
        %s278 = smul.addr %s277, 2
        %s279 = smul.addr %s278, 4
        %s280 = scalar_lea.vmem %s0, %s279
        %p281 = pneg %p41
        %p282 = pneg %p38
        %p283 = pneg %p62
        %p284 = pneg %p59
        %p285 = pneg %p83
        %p286 = pneg %p80
        %p287 = pneg %p104
        %p288 = pneg %p101
        %p289 = pneg %p125
        %p290 = pneg %p122
        %p291 = pneg %p146
        %p292 = pneg %p143
        %p293 = pneg %p167
        %p294 = pneg %p164
        %p295 = pneg %p193
        %p296 = pneg %p190
        %s297 = smul.u32 4, %s20
        %p298 = scmp.lt.s32.totalorder %s297, 7
        %s299 = scalar_select %p298, %s297, 7
        %s300 = smul.addr %s299, 8
        %s301 = scalar_lea.vmem %s7, %s300
        %s302 = smul.u32 4, %s20
        %p303 = scmp.lt.s32.totalorder %s302, 7
        %s304 = scalar_select %p303, %s302, 7
        %s305 = smul.addr %s304, 2
        %s306 = smul.addr %s305, 4
        %s307 = scalar_lea.vmem %s0, %s306
        %s308 = smul.u32 4, %s20
        %s309 = smul.u32 4, %s20
        %p310 = scmp.lt.s32.totalorder %s309, 7
        %s311 = scalar_select %p310, %s309, 7
        %s312 = smul.addr %s311, 8
        %s313 = scalar_lea.vmem %s7, %s312
        %s314 = smul.u32 4, %s20
        %v316 = vld [vmem:[%s307] sm:$0xff]
        %v317 = vld [vmem:[%s307 + $0x8] sm:$0xff]
        %v318 = vld [vmem:[%s307 + $0x10] sm:$0xff]
        %v319 = vld [vmem:[%s307 + $0x18] sm:$0xff]
        %v320 = vld [vmem:[#allocation2] sm:$0xff]
        %v321 = vld [vmem:[#allocation2 + $0x8] sm:$0xff]
        %v322 = vld [vmem:[#allocation2 + $0x10] sm:$0xff]
        %v323 = vld [vmem:[#allocation2 + $0x18] sm:$0xff]
        %v324 = vld [vmem:[#allocation2 + $0x20] sm:$0xff]
        %v325 = vld [vmem:[#allocation2 + $0x28] sm:$0xff]
        %v326 = vld [vmem:[#allocation2 + $0x30] sm:$0xff]
        %v327 = vld [vmem:[#allocation2 + $0x38] sm:$0xff]
        %v328 = vld [vmem:[#allocation2 + $0x40] sm:$0xff]
        %v329 = vld [vmem:[#allocation2 + $0x48] sm:$0xff]
        %v330 = vld [vmem:[#allocation2 + $0x50] sm:$0xff]
        %v331 = vld [vmem:[#allocation2 + $0x58] sm:$0xff]
        %v332 = vld [vmem:[#allocation2 + $0x60] sm:$0xff]
        %v333 = vld [vmem:[#allocation2 + $0x68] sm:$0xff]
        %v334 = vld [vmem:[#allocation2 + $0x70] sm:$0xff]
        %v335 = vld [vmem:[#allocation2 + $0x78] sm:$0xff]
        %v336 = vld [vmem:[#allocation2 + $0x80] sm:$0xff]
        %v337 = vld [vmem:[#allocation2 + $0x88] sm:$0xff]
        %v338 = vld [vmem:[#allocation2 + $0x90] sm:$0xff]
        %v339 = vld [vmem:[#allocation2 + $0x98] sm:$0xff]
        %v340 = vld [vmem:[#allocation2 + $0xa0] sm:$0xff]
        %v341 = vld [vmem:[#allocation2 + $0xa8] sm:$0xff]
        %v342 = vld [vmem:[#allocation2 + $0xb0] sm:$0xff]
        %v343 = vld [vmem:[#allocation2 + $0xb8] sm:$0xff]
        %v344 = vld [vmem:[#allocation2 + $0xc0] sm:$0xff]
        %v345 = vld [vmem:[#allocation2 + $0xc8] sm:$0xff]
        %v346 = vld [vmem:[#allocation2 + $0xd0] sm:$0xff]
        %v347 = vld [vmem:[#allocation2 + $0xd8] sm:$0xff]
        %v348 = vld [vmem:[#allocation2 + $0xe0] sm:$0xff]
        %v349 = vld [vmem:[#allocation2 + $0xe8] sm:$0xff]
        %v350 = vld [vmem:[#allocation2 + $0xf0] sm:$0xff]
        %v351 = vld [vmem:[#allocation2 + $0xf8] sm:$0xff]
        %v352 = vld [vmem:[%s2] sm:$0x3]
        %v354 = vlaneseq
        %v355 = vshrl.u32 %v354, 7
        %v356 = vsub.s32 0, %v355
        %v357 = vrot.slane %v352, %v356
        %v358 = vlaneseq
        %v359 = vshrl.u32 %v358, 7
        %v360 = vsub.s32 1, %v359
        %v361 = vrot.slane %v352, %v360
        %v368 = vunpack.c.l.b16 %v316
        %v369 = vunpack.c.h.b16 %v316
        %v370 = vunpack.c.l.b16 %v317
        %v371 = vunpack.c.h.b16 %v317
        %v372 = vunpack.c.l.b16 %v318
        %v373 = vunpack.c.h.b16 %v318
        %v374 = vunpack.c.l.b16 %v319
        %v375 = vunpack.c.h.b16 %v319
        %v376 = vpack.c.b16 %v370, %v368
        %v377 = vpack.c.b16 %v371, %v369
        %v378 = vpack.c.b16 %v374, %v372
        %v379 = vpack.c.b16 %v375, %v373
        %v416 = vunpack.c.l.b16 %v320
        %v417 = vunpack.c.h.b16 %v320
        %v418 = vunpack.c.l.b16 %v321
        %v419 = vunpack.c.h.b16 %v321
        %v420 = vunpack.c.l.b16 %v322
        %v421 = vunpack.c.h.b16 %v322
        %v422 = vunpack.c.l.b16 %v323
        %v423 = vunpack.c.h.b16 %v323
        %v424 = vunpack.c.l.b16 %v324
        %v425 = vunpack.c.h.b16 %v324
        %v426 = vunpack.c.l.b16 %v325
        %v427 = vunpack.c.h.b16 %v325
        %v428 = vunpack.c.l.b16 %v326
        %v429 = vunpack.c.h.b16 %v326
        %v430 = vunpack.c.l.b16 %v327
        %v431 = vunpack.c.h.b16 %v327
        %v432 = vunpack.c.l.b16 %v328
        %v433 = vunpack.c.h.b16 %v328
        %v434 = vunpack.c.l.b16 %v329
        %v435 = vunpack.c.h.b16 %v329
        %v436 = vunpack.c.l.b16 %v330
        %v437 = vunpack.c.h.b16 %v330
        %v438 = vunpack.c.l.b16 %v331
        %v439 = vunpack.c.h.b16 %v331
        %v440 = vunpack.c.l.b16 %v332
        %v441 = vunpack.c.h.b16 %v332
        %v442 = vunpack.c.l.b16 %v333
        %v443 = vunpack.c.h.b16 %v333
        %v444 = vunpack.c.l.b16 %v334
        %v445 = vunpack.c.h.b16 %v334
        %v446 = vunpack.c.l.b16 %v335
        %v447 = vunpack.c.h.b16 %v335
        %v448 = vunpack.c.l.b16 %v336
        %v449 = vunpack.c.h.b16 %v336
        %v450 = vunpack.c.l.b16 %v337
        %v451 = vunpack.c.h.b16 %v337
        %v452 = vunpack.c.l.b16 %v338
        %v453 = vunpack.c.h.b16 %v338
        %v454 = vunpack.c.l.b16 %v339
        %v455 = vunpack.c.h.b16 %v339
        %v456 = vunpack.c.l.b16 %v340
        %v457 = vunpack.c.h.b16 %v340
        %v458 = vunpack.c.l.b16 %v341
        %v459 = vunpack.c.h.b16 %v341
        %v460 = vunpack.c.l.b16 %v342
        %v461 = vunpack.c.h.b16 %v342
        %v462 = vunpack.c.l.b16 %v343
        %v463 = vunpack.c.h.b16 %v343
        %v464 = vunpack.c.l.b16 %v344
        %v465 = vunpack.c.h.b16 %v344
        %v466 = vunpack.c.l.b16 %v345
        %v467 = vunpack.c.h.b16 %v345
        %v468 = vunpack.c.l.b16 %v346
        %v469 = vunpack.c.h.b16 %v346
        %v470 = vunpack.c.l.b16 %v347
        %v471 = vunpack.c.h.b16 %v347
        %v472 = vunpack.c.l.b16 %v348
        %v473 = vunpack.c.h.b16 %v348
        %v474 = vunpack.c.l.b16 %v349
        %v475 = vunpack.c.h.b16 %v349
        %v476 = vunpack.c.l.b16 %v350
        %v477 = vunpack.c.h.b16 %v350
        %v478 = vunpack.c.l.b16 %v351
        %v479 = vunpack.c.h.b16 %v351
        %v480 = vpack.c.b16 %v418, %v416
        %v481 = vpack.c.b16 %v419, %v417
        %v482 = vpack.c.b16 %v422, %v420
        %v483 = vpack.c.b16 %v423, %v421
        %v484 = vpack.c.b16 %v426, %v424
        %v485 = vpack.c.b16 %v427, %v425
        %v486 = vpack.c.b16 %v430, %v428
        %v487 = vpack.c.b16 %v431, %v429
        %v488 = vpack.c.b16 %v434, %v432
        %v489 = vpack.c.b16 %v435, %v433
        %v490 = vpack.c.b16 %v438, %v436
        %v491 = vpack.c.b16 %v439, %v437
        %v492 = vpack.c.b16 %v442, %v440
        %v493 = vpack.c.b16 %v443, %v441
        %v494 = vpack.c.b16 %v446, %v444
        %v495 = vpack.c.b16 %v447, %v445
        %v496 = vpack.c.b16 %v450, %v448
        %v497 = vpack.c.b16 %v451, %v449
        %v498 = vpack.c.b16 %v454, %v452
        %v499 = vpack.c.b16 %v455, %v453
        %v500 = vpack.c.b16 %v458, %v456
        %v501 = vpack.c.b16 %v459, %v457
        %v502 = vpack.c.b16 %v462, %v460
        %v503 = vpack.c.b16 %v463, %v461
        %v504 = vpack.c.b16 %v466, %v464
        %v505 = vpack.c.b16 %v467, %v465
        %v506 = vpack.c.b16 %v470, %v468
        %v507 = vpack.c.b16 %v471, %v469
        %v508 = vpack.c.b16 %v474, %v472
        %v509 = vpack.c.b16 %v475, %v473
        %v510 = vpack.c.b16 %v478, %v476
        %v511 = vpack.c.b16 %v479, %v477
        %544 = vmatprep.subr.bf16.mxu0 %v481
        %545 = vmatpush1.bf16.msra.mxu0 %v480
        %546 = vmatprep.subr.bf16.mxu0 %v483
        %547 = vmatpush1.bf16.msra.mxu0 %v482
        %548 = vmatprep.subr.bf16.mxu0 %v485
        %549 = vmatpush1.bf16.msra.mxu0 %v484
        %550 = vmatprep.subr.bf16.mxu0 %v487
        %551 = vmatpush1.bf16.msra.mxu0 %v486
        %552 = vmatprep.subr.bf16.mxu0 %v489
        %553 = vmatpush1.bf16.msra.mxu0 %v488
        %554 = vmatprep.subr.bf16.mxu0 %v491
        %555 = vmatpush1.bf16.msra.mxu0 %v490
        %556 = vmatprep.subr.bf16.mxu0 %v493
        %557 = vmatpush1.bf16.msra.mxu0 %v492
        %558 = vmatprep.subr.bf16.mxu0 %v495
        %559 = vmatpush1.bf16.msra.mxu0 %v494
        %560 = vmatprep.subr.bf16.mxu0 %v497
        %561 = vmatpush1.bf16.msra.mxu0 %v496
        %562 = vmatprep.subr.bf16.mxu0 %v499
        %563 = vmatpush1.bf16.msra.mxu0 %v498
        %564 = vmatprep.subr.bf16.mxu0 %v501
        %565 = vmatpush1.bf16.msra.mxu0 %v500
        %566 = vmatprep.subr.bf16.mxu0 %v503
        %567 = vmatpush1.bf16.msra.mxu0 %v502
        %568 = vmatprep.subr.bf16.mxu0 %v505
        %569 = vmatpush1.bf16.msra.mxu0 %v504
        %570 = vmatprep.subr.bf16.mxu0 %v507
        %571 = vmatpush1.bf16.msra.mxu0 %v506
        %572 = vmatprep.subr.bf16.mxu0 %v509
        %573 = vmatpush1.bf16.msra.mxu0 %v508
        %574 = vmatprep.subr.bf16.mxu0 %v511
        %575 = vmatpush1.bf16.msra.mxu0 %v510
        %576 = vmatprep.mubr.bf16.mxu0 %v377
        %577 = vmatmul.mubr.bf16.gmra.mrb[0].mxu0 %v376
        %v578 = vpop.f32.mrb[0].mxu0
        %v579 = vadd.f32 %v357, %v578
        %v580 = vpop.f32.mrb[0].mxu0
        %v581 = vadd.f32 %v361, %v580
        %v582 = vpop.f32.mrb[0].mxu0
        %v583 = vadd.f32 %v357, %v582
        %v584 = vpop.f32.mrb[0].mxu0
        %v585 = vadd.f32 %v361, %v584
        %586 = vmatprep.mubr.bf16.mxu0 %v379
        %587 = vmatmul.mubr.bf16.gmra.mrb[0].mxu0 %v378
        %v588 = vpop.f32.mrb[0].mxu0
        %v589 = vadd.f32 %v357, %v588
        %v590 = vpop.f32.mrb[0].mxu0
        %v591 = vadd.f32 %v361, %v590
        %v592 = vpop.f32.mrb[0].mxu0
        %v593 = vadd.f32 %v357, %v592
        %v594 = vpop.f32.mrb[0].mxu0
        %v595 = vadd.f32 %v361, %v594
        %596 = vdwg.mxu0
        %v597 = vmax.f32 %v579, 0.0
        %v598 = vmax.f32 %v581, 0.0
        %v599 = vmax.f32 %v583, 0.0
        %v600 = vmax.f32 %v585, 0.0
        %v601 = vmax.f32 %v589, 0.0
        %v602 = vmax.f32 %v591, 0.0
        %v603 = vmax.f32 %v593, 0.0
        %v604 = vmax.f32 %v595, 0.0
        %v605 = vpack.c.bf16 %v599, %v597
        %v606 = vpack.c.bf16 %v600, %v598
        %v607 = vpack.c.bf16 %v603, %v601
        %v608 = vpack.c.bf16 %v604, %v602
        %s609 = scalar_lea.vmem [#allocation2], 256
        %v610 = vld [vmem:[%s609] sm:$0xff]
        %v611 = vld [vmem:[%s609 + $0x8] sm:$0xff]
        %v612 = vld [vmem:[%s609 + $0x10] sm:$0xff]
        %v613 = vld [vmem:[%s609 + $0x18] sm:$0xff]
        %v614 = vld [vmem:[%s609 + $0x20] sm:$0xff]
        %v615 = vld [vmem:[%s609 + $0x28] sm:$0xff]
        %v616 = vld [vmem:[%s609 + $0x30] sm:$0xff]
        %v617 = vld [vmem:[%s609 + $0x38] sm:$0xff]
        %v618 = vld [vmem:[%s609 + $0x40] sm:$0xff]
        %v619 = vld [vmem:[%s609 + $0x48] sm:$0xff]
        %v620 = vld [vmem:[%s609 + $0x50] sm:$0xff]
        %v621 = vld [vmem:[%s609 + $0x58] sm:$0xff]
        %v622 = vld [vmem:[%s609 + $0x60] sm:$0xff]
        %v623 = vld [vmem:[%s609 + $0x68] sm:$0xff]
        %v624 = vld [vmem:[%s609 + $0x70] sm:$0xff]
        %v625 = vld [vmem:[%s609 + $0x78] sm:$0xff]
        %v626 = vld [vmem:[%s609 + $0x80] sm:$0xff]
        %v627 = vld [vmem:[%s609 + $0x88] sm:$0xff]
        %v628 = vld [vmem:[%s609 + $0x90] sm:$0xff]
        %v629 = vld [vmem:[%s609 + $0x98] sm:$0xff]
        %v630 = vld [vmem:[%s609 + $0xa0] sm:$0xff]
        %v631 = vld [vmem:[%s609 + $0xa8] sm:$0xff]
        %v632 = vld [vmem:[%s609 + $0xb0] sm:$0xff]
        %v633 = vld [vmem:[%s609 + $0xb8] sm:$0xff]
        %v634 = vld [vmem:[%s609 + $0xc0] sm:$0xff]
        %v635 = vld [vmem:[%s609 + $0xc8] sm:$0xff]
        %v636 = vld [vmem:[%s609 + $0xd0] sm:$0xff]
        %v637 = vld [vmem:[%s609 + $0xd8] sm:$0xff]
        %v638 = vld [vmem:[%s609 + $0xe0] sm:$0xff]
        %v639 = vld [vmem:[%s609 + $0xe8] sm:$0xff]
        %v640 = vld [vmem:[%s609 + $0xf0] sm:$0xff]
        %v641 = vld [vmem:[%s609 + $0xf8] sm:$0xff]
        %s642 = scalar_lea.vmem %s2, 2
        %v643 = vld [vmem:[%s642] sm:$0x3]
        %v645 = vlaneseq
        %v646 = vshrl.u32 %v645, 7
        %v647 = vsub.s32 0, %v646
        %v648 = vrot.slane %v643, %v647
        %v649 = vlaneseq
        %v650 = vshrl.u32 %v649, 7
        %v651 = vsub.s32 1, %v650
        %v652 = vrot.slane %v643, %v651
        %v687 = vunpack.c.l.b16 %v610
        %v688 = vunpack.c.h.b16 %v610
        %v689 = vunpack.c.l.b16 %v611
        %v690 = vunpack.c.h.b16 %v611
        %v691 = vunpack.c.l.b16 %v612
        %v692 = vunpack.c.h.b16 %v612
        %v693 = vunpack.c.l.b16 %v613
        %v694 = vunpack.c.h.b16 %v613
        %v695 = vunpack.c.l.b16 %v614
        %v696 = vunpack.c.h.b16 %v614
        %v697 = vunpack.c.l.b16 %v615
        %v698 = vunpack.c.h.b16 %v615
        %v699 = vunpack.c.l.b16 %v616
        %v700 = vunpack.c.h.b16 %v616
        %v701 = vunpack.c.l.b16 %v617
        %v702 = vunpack.c.h.b16 %v617
        %v703 = vunpack.c.l.b16 %v618
        %v704 = vunpack.c.h.b16 %v618
        %v705 = vunpack.c.l.b16 %v619
        %v706 = vunpack.c.h.b16 %v619
        %v707 = vunpack.c.l.b16 %v620
        %v708 = vunpack.c.h.b16 %v620
        %v709 = vunpack.c.l.b16 %v621
        %v710 = vunpack.c.h.b16 %v621
        %v711 = vunpack.c.l.b16 %v622
        %v712 = vunpack.c.h.b16 %v622
        %v713 = vunpack.c.l.b16 %v623
        %v714 = vunpack.c.h.b16 %v623
        %v715 = vunpack.c.l.b16 %v624
        %v716 = vunpack.c.h.b16 %v624
        %v717 = vunpack.c.l.b16 %v625
        %v718 = vunpack.c.h.b16 %v625
        %v719 = vunpack.c.l.b16 %v626
        %v720 = vunpack.c.h.b16 %v626
        %v721 = vunpack.c.l.b16 %v627
        %v722 = vunpack.c.h.b16 %v627
        %v723 = vunpack.c.l.b16 %v628
        %v724 = vunpack.c.h.b16 %v628
        %v725 = vunpack.c.l.b16 %v629
        %v726 = vunpack.c.h.b16 %v629
        %v727 = vunpack.c.l.b16 %v630
        %v728 = vunpack.c.h.b16 %v630
        %v729 = vunpack.c.l.b16 %v631
        %v730 = vunpack.c.h.b16 %v631
        %v731 = vunpack.c.l.b16 %v632
        %v732 = vunpack.c.h.b16 %v632
        %v733 = vunpack.c.l.b16 %v633
        %v734 = vunpack.c.h.b16 %v633
        %v735 = vunpack.c.l.b16 %v634
        %v736 = vunpack.c.h.b16 %v634
        %v737 = vunpack.c.l.b16 %v635
        %v738 = vunpack.c.h.b16 %v635
        %v739 = vunpack.c.l.b16 %v636
        %v740 = vunpack.c.h.b16 %v636
        %v741 = vunpack.c.l.b16 %v637
        %v742 = vunpack.c.h.b16 %v637
        %v743 = vunpack.c.l.b16 %v638
        %v744 = vunpack.c.h.b16 %v638
        %v745 = vunpack.c.l.b16 %v639
        %v746 = vunpack.c.h.b16 %v639
        %v747 = vunpack.c.l.b16 %v640
        %v748 = vunpack.c.h.b16 %v640
        %v749 = vunpack.c.l.b16 %v641
        %v750 = vunpack.c.h.b16 %v641
        %v751 = vpack.c.b16 %v689, %v687
        %v752 = vpack.c.b16 %v690, %v688
        %v753 = vpack.c.b16 %v693, %v691
        %v754 = vpack.c.b16 %v694, %v692
        %v755 = vpack.c.b16 %v697, %v695
        %v756 = vpack.c.b16 %v698, %v696
        %v757 = vpack.c.b16 %v701, %v699
        %v758 = vpack.c.b16 %v702, %v700
        %v759 = vpack.c.b16 %v705, %v703
        %v760 = vpack.c.b16 %v706, %v704
        %v761 = vpack.c.b16 %v709, %v707
        %v762 = vpack.c.b16 %v710, %v708
        %v763 = vpack.c.b16 %v713, %v711
        %v764 = vpack.c.b16 %v714, %v712
        %v765 = vpack.c.b16 %v717, %v715
        %v766 = vpack.c.b16 %v718, %v716
        %v767 = vpack.c.b16 %v721, %v719
        %v768 = vpack.c.b16 %v722, %v720
        %v769 = vpack.c.b16 %v725, %v723
        %v770 = vpack.c.b16 %v726, %v724
        %v771 = vpack.c.b16 %v729, %v727
        %v772 = vpack.c.b16 %v730, %v728
        %v773 = vpack.c.b16 %v733, %v731
        %v774 = vpack.c.b16 %v734, %v732
        %v775 = vpack.c.b16 %v737, %v735
        %v776 = vpack.c.b16 %v738, %v736
        %v777 = vpack.c.b16 %v741, %v739
        %v778 = vpack.c.b16 %v742, %v740
        %v779 = vpack.c.b16 %v745, %v743
        %v780 = vpack.c.b16 %v746, %v744
        %v781 = vpack.c.b16 %v749, %v747
        %v782 = vpack.c.b16 %v750, %v748
        %815 = vmatprep.subr.bf16.mxu0 %v752
        %816 = vmatpush1.bf16.msra.mxu0 %v751
        %817 = vmatprep.subr.bf16.mxu0 %v754
        %818 = vmatpush1.bf16.msra.mxu0 %v753
        %819 = vmatprep.subr.bf16.mxu0 %v756
        %820 = vmatpush1.bf16.msra.mxu0 %v755
        %821 = vmatprep.subr.bf16.mxu0 %v758
        %822 = vmatpush1.bf16.msra.mxu0 %v757
        %823 = vmatprep.subr.bf16.mxu0 %v760
        %824 = vmatpush1.bf16.msra.mxu0 %v759
        %825 = vmatprep.subr.bf16.mxu0 %v762
        %826 = vmatpush1.bf16.msra.mxu0 %v761
        %827 = vmatprep.subr.bf16.mxu0 %v764
        %828 = vmatpush1.bf16.msra.mxu0 %v763
        %829 = vmatprep.subr.bf16.mxu0 %v766
        %830 = vmatpush1.bf16.msra.mxu0 %v765
        %831 = vmatprep.subr.bf16.mxu0 %v768
        %832 = vmatpush1.bf16.msra.mxu0 %v767
        %833 = vmatprep.subr.bf16.mxu0 %v770
        %834 = vmatpush1.bf16.msra.mxu0 %v769
        %835 = vmatprep.subr.bf16.mxu0 %v772
        %836 = vmatpush1.bf16.msra.mxu0 %v771
        %837 = vmatprep.subr.bf16.mxu0 %v774
        %838 = vmatpush1.bf16.msra.mxu0 %v773
        %839 = vmatprep.subr.bf16.mxu0 %v776
        %840 = vmatpush1.bf16.msra.mxu0 %v775
        %841 = vmatprep.subr.bf16.mxu0 %v778
        %842 = vmatpush1.bf16.msra.mxu0 %v777
        %843 = vmatprep.subr.bf16.mxu0 %v780
        %844 = vmatpush1.bf16.msra.mxu0 %v779
        %845 = vmatprep.subr.bf16.mxu0 %v782
        %846 = vmatpush1.bf16.msra.mxu0 %v781
        %847 = vmatprep.mubr.bf16.mxu0 %v606
        %848 = vmatmul.mubr.bf16.gmra.mrb[0].mxu0 %v605
        %v849 = vpop.f32.mrb[0].mxu0
        %v850 = vadd.f32 %v648, %v849
        %v851 = vpop.f32.mrb[0].mxu0
        %v852 = vadd.f32 %v652, %v851
        %v853 = vpop.f32.mrb[0].mxu0
        %v854 = vadd.f32 %v648, %v853
        %v855 = vpop.f32.mrb[0].mxu0
        %v856 = vadd.f32 %v652, %v855
        %857 = vmatprep.mubr.bf16.mxu0 %v608
        %858 = vmatmul.mubr.bf16.gmra.mrb[0].mxu0 %v607
        %v859 = vpop.f32.mrb[0].mxu0
        %v860 = vadd.f32 %v648, %v859
        %v861 = vpop.f32.mrb[0].mxu0
        %v862 = vadd.f32 %v652, %v861
        %v863 = vpop.f32.mrb[0].mxu0
        %v864 = vadd.f32 %v648, %v863
        %v865 = vpop.f32.mrb[0].mxu0
        %v866 = vadd.f32 %v652, %v865
        %867 = vdwg.mxu0
        %v868 = vmax.f32 %v850, 0.0
        %v869 = vmax.f32 %v852, 0.0
        %v870 = vmax.f32 %v854, 0.0
        %v871 = vmax.f32 %v856, 0.0
        %v872 = vmax.f32 %v860, 0.0
        %v873 = vmax.f32 %v862, 0.0
        %v874 = vmax.f32 %v864, 0.0
        %v875 = vmax.f32 %v866, 0.0
        %v876 = vpack.c.bf16 %v870, %v868
        %v877 = vpack.c.bf16 %v871, %v869
        %v878 = vpack.c.bf16 %v874, %v872
        %v879 = vpack.c.bf16 %v875, %v873
        %s880 = scalar_lea.vmem [#allocation2], 512
        %v881 = vld [vmem:[%s880] sm:$0xff]
        %v882 = vld [vmem:[%s880 + $0x8] sm:$0xff]
        %v883 = vld [vmem:[%s880 + $0x10] sm:$0xff]
        %v884 = vld [vmem:[%s880 + $0x18] sm:$0xff]
        %v885 = vld [vmem:[%s880 + $0x20] sm:$0xff]
        %v886 = vld [vmem:[%s880 + $0x28] sm:$0xff]
        %v887 = vld [vmem:[%s880 + $0x30] sm:$0xff]
        %v888 = vld [vmem:[%s880 + $0x38] sm:$0xff]
        %v889 = vld [vmem:[%s880 + $0x40] sm:$0xff]
        %v890 = vld [vmem:[%s880 + $0x48] sm:$0xff]
        %v891 = vld [vmem:[%s880 + $0x50] sm:$0xff]
        %v892 = vld [vmem:[%s880 + $0x58] sm:$0xff]
        %v893 = vld [vmem:[%s880 + $0x60] sm:$0xff]
        %v894 = vld [vmem:[%s880 + $0x68] sm:$0xff]
        %v895 = vld [vmem:[%s880 + $0x70] sm:$0xff]
        %v896 = vld [vmem:[%s880 + $0x78] sm:$0xff]
        %v897 = vld [vmem:[%s880 + $0x80] sm:$0xff]
        %v898 = vld [vmem:[%s880 + $0x88] sm:$0xff]
        %v899 = vld [vmem:[%s880 + $0x90] sm:$0xff]
        %v900 = vld [vmem:[%s880 + $0x98] sm:$0xff]
        %v901 = vld [vmem:[%s880 + $0xa0] sm:$0xff]
        %v902 = vld [vmem:[%s880 + $0xa8] sm:$0xff]
        %v903 = vld [vmem:[%s880 + $0xb0] sm:$0xff]
        %v904 = vld [vmem:[%s880 + $0xb8] sm:$0xff]
        %v905 = vld [vmem:[%s880 + $0xc0] sm:$0xff]
        %v906 = vld [vmem:[%s880 + $0xc8] sm:$0xff]
        %v907 = vld [vmem:[%s880 + $0xd0] sm:$0xff]
        %v908 = vld [vmem:[%s880 + $0xd8] sm:$0xff]
        %v909 = vld [vmem:[%s880 + $0xe0] sm:$0xff]
        %v910 = vld [vmem:[%s880 + $0xe8] sm:$0xff]
        %v911 = vld [vmem:[%s880 + $0xf0] sm:$0xff]
        %v912 = vld [vmem:[%s880 + $0xf8] sm:$0xff]
        %s913 = scalar_lea.vmem %s2, 4
        %v914 = vld [vmem:[%s913] sm:$0x3]
        %v916 = vlaneseq
        %v917 = vshrl.u32 %v916, 7
        %v918 = vsub.s32 0, %v917
        %v919 = vrot.slane %v914, %v918
        %v920 = vlaneseq
        %v921 = vshrl.u32 %v920, 7
        %v922 = vsub.s32 1, %v921
        %v923 = vrot.slane %v914, %v922
        %v958 = vunpack.c.l.b16 %v881
        %v959 = vunpack.c.h.b16 %v881
        %v960 = vunpack.c.l.b16 %v882
        %v961 = vunpack.c.h.b16 %v882
        %v962 = vunpack.c.l.b16 %v883
        %v963 = vunpack.c.h.b16 %v883
        %v964 = vunpack.c.l.b16 %v884
        %v965 = vunpack.c.h.b16 %v884
        %v966 = vunpack.c.l.b16 %v885
        %v967 = vunpack.c.h.b16 %v885
        %v968 = vunpack.c.l.b16 %v886
        %v969 = vunpack.c.h.b16 %v886
        %v970 = vunpack.c.l.b16 %v887
        %v971 = vunpack.c.h.b16 %v887
        %v972 = vunpack.c.l.b16 %v888
        %v973 = vunpack.c.h.b16 %v888
        %v974 = vunpack.c.l.b16 %v889
        %v975 = vunpack.c.h.b16 %v889
        %v976 = vunpack.c.l.b16 %v890
        %v977 = vunpack.c.h.b16 %v890
        %v978 = vunpack.c.l.b16 %v891
        %v979 = vunpack.c.h.b16 %v891
        %v980 = vunpack.c.l.b16 %v892
        %v981 = vunpack.c.h.b16 %v892
        %v982 = vunpack.c.l.b16 %v893
        %v983 = vunpack.c.h.b16 %v893
        %v984 = vunpack.c.l.b16 %v894
        %v985 = vunpack.c.h.b16 %v894
        %v986 = vunpack.c.l.b16 %v895
        %v987 = vunpack.c.h.b16 %v895
        %v988 = vunpack.c.l.b16 %v896
        %v989 = vunpack.c.h.b16 %v896
        %v990 = vunpack.c.l.b16 %v897
        %v991 = vunpack.c.h.b16 %v897
        %v992 = vunpack.c.l.b16 %v898
        %v993 = vunpack.c.h.b16 %v898
        %v994 = vunpack.c.l.b16 %v899
        %v995 = vunpack.c.h.b16 %v899
        %v996 = vunpack.c.l.b16 %v900
        %v997 = vunpack.c.h.b16 %v900
        %v998 = vunpack.c.l.b16 %v901
        %v999 = vunpack.c.h.b16 %v901
        %v1000 = vunpack.c.l.b16 %v902
        %v1001 = vunpack.c.h.b16 %v902
        %v1002 = vunpack.c.l.b16 %v903
        %v1003 = vunpack.c.h.b16 %v903
        %v1004 = vunpack.c.l.b16 %v904
        %v1005 = vunpack.c.h.b16 %v904
        %v1006 = vunpack.c.l.b16 %v905
        %v1007 = vunpack.c.h.b16 %v905
        %v1008 = vunpack.c.l.b16 %v906
        %v1009 = vunpack.c.h.b16 %v906
        %v1010 = vunpack.c.l.b16 %v907
        %v1011 = vunpack.c.h.b16 %v907
        %v1012 = vunpack.c.l.b16 %v908
        %v1013 = vunpack.c.h.b16 %v908
        %v1014 = vunpack.c.l.b16 %v909
        %v1015 = vunpack.c.h.b16 %v909
        %v1016 = vunpack.c.l.b16 %v910
        %v1017 = vunpack.c.h.b16 %v910
        %v1018 = vunpack.c.l.b16 %v911
        %v1019 = vunpack.c.h.b16 %v911
        %v1020 = vunpack.c.l.b16 %v912
        %v1021 = vunpack.c.h.b16 %v912
        %v1022 = vpack.c.b16 %v960, %v958
        %v1023 = vpack.c.b16 %v961, %v959
        %v1024 = vpack.c.b16 %v964, %v962
        %v1025 = vpack.c.b16 %v965, %v963
        %v1026 = vpack.c.b16 %v968, %v966
        %v1027 = vpack.c.b16 %v969, %v967
        %v1028 = vpack.c.b16 %v972, %v970
        %v1029 = vpack.c.b16 %v973, %v971
        %v1030 = vpack.c.b16 %v976, %v974
        %v1031 = vpack.c.b16 %v977, %v975
        %v1032 = vpack.c.b16 %v980, %v978
        %v1033 = vpack.c.b16 %v981, %v979
        %v1034 = vpack.c.b16 %v984, %v982
        %v1035 = vpack.c.b16 %v985, %v983
        %v1036 = vpack.c.b16 %v988, %v986
        %v1037 = vpack.c.b16 %v989, %v987
        %v1038 = vpack.c.b16 %v992, %v990
        %v1039 = vpack.c.b16 %v993, %v991
        %v1040 = vpack.c.b16 %v996, %v994
        %v1041 = vpack.c.b16 %v997, %v995
        %v1042 = vpack.c.b16 %v1000, %v998
        %v1043 = vpack.c.b16 %v1001, %v999
        %v1044 = vpack.c.b16 %v1004, %v1002
        %v1045 = vpack.c.b16 %v1005, %v1003
        %v1046 = vpack.c.b16 %v1008, %v1006
        %v1047 = vpack.c.b16 %v1009, %v1007
        %v1048 = vpack.c.b16 %v1012, %v1010
        %v1049 = vpack.c.b16 %v1013, %v1011
        %v1050 = vpack.c.b16 %v1016, %v1014
        %v1051 = vpack.c.b16 %v1017, %v1015
        %v1052 = vpack.c.b16 %v1020, %v1018
        %v1053 = vpack.c.b16 %v1021, %v1019
        %1086 = vmatprep.subr.bf16.mxu0 %v1023
        %1087 = vmatpush1.bf16.msra.mxu0 %v1022
        %1088 = vmatprep.subr.bf16.mxu0 %v1025
        %1089 = vmatpush1.bf16.msra.mxu0 %v1024
        %1090 = vmatprep.subr.bf16.mxu0 %v1027
        %1091 = vmatpush1.bf16.msra.mxu0 %v1026
        %1092 = vmatprep.subr.bf16.mxu0 %v1029
        %1093 = vmatpush1.bf16.msra.mxu0 %v1028
        %1094 = vmatprep.subr.bf16.mxu0 %v1031
        %1095 = vmatpush1.bf16.msra.mxu0 %v1030
        %1096 = vmatprep.subr.bf16.mxu0 %v1033
        %1097 = vmatpush1.bf16.msra.mxu0 %v1032
        %1098 = vmatprep.subr.bf16.mxu0 %v1035
        %1099 = vmatpush1.bf16.msra.mxu0 %v1034
        %1100 = vmatprep.subr.bf16.mxu0 %v1037
        %1101 = vmatpush1.bf16.msra.mxu0 %v1036
        %1102 = vmatprep.subr.bf16.mxu0 %v1039
        %1103 = vmatpush1.bf16.msra.mxu0 %v1038
        %1104 = vmatprep.subr.bf16.mxu0 %v1041
        %1105 = vmatpush1.bf16.msra.mxu0 %v1040
        %1106 = vmatprep.subr.bf16.mxu0 %v1043
        %1107 = vmatpush1.bf16.msra.mxu0 %v1042
        %1108 = vmatprep.subr.bf16.mxu0 %v1045
        %1109 = vmatpush1.bf16.msra.mxu0 %v1044
        %1110 = vmatprep.subr.bf16.mxu0 %v1047
        %1111 = vmatpush1.bf16.msra.mxu0 %v1046
        %1112 = vmatprep.subr.bf16.mxu0 %v1049
        %1113 = vmatpush1.bf16.msra.mxu0 %v1048
        %1114 = vmatprep.subr.bf16.mxu0 %v1051
        %1115 = vmatpush1.bf16.msra.mxu0 %v1050
        %1116 = vmatprep.subr.bf16.mxu0 %v1053
        %1117 = vmatpush1.bf16.msra.mxu0 %v1052
        %1118 = vmatprep.mubr.bf16.mxu0 %v877
        %1119 = vmatmul.mubr.bf16.gmra.mrb[0].mxu0 %v876
        %v1120 = vpop.f32.mrb[0].mxu0
        %v1121 = vadd.f32 %v919, %v1120
        %v1122 = vpop.f32.mrb[0].mxu0
        %v1123 = vadd.f32 %v923, %v1122
        %v1124 = vpop.f32.mrb[0].mxu0
        %v1125 = vadd.f32 %v919, %v1124
        %v1126 = vpop.f32.mrb[0].mxu0
        %v1127 = vadd.f32 %v923, %v1126
        %1128 = vmatprep.mubr.bf16.mxu0 %v879
        %1129 = vmatmul.mubr.bf16.gmra.mrb[0].mxu0 %v878
        %v1130 = vpop.f32.mrb[0].mxu0
        %v1131 = vadd.f32 %v919, %v1130
        %v1132 = vpop.f32.mrb[0].mxu0
        %v1133 = vadd.f32 %v923, %v1132
        %v1134 = vpop.f32.mrb[0].mxu0
        %v1135 = vadd.f32 %v919, %v1134
        %v1136 = vpop.f32.mrb[0].mxu0
        %v1137 = vadd.f32 %v923, %v1136
        %1138 = vdwg.mxu0
        %v1139 = vmax.f32 %v1121, 0.0
        %v1140 = vmax.f32 %v1123, 0.0
        %v1141 = vmax.f32 %v1125, 0.0
        %v1142 = vmax.f32 %v1127, 0.0
        %v1143 = vmax.f32 %v1131, 0.0
        %v1144 = vmax.f32 %v1133, 0.0
        %v1145 = vmax.f32 %v1135, 0.0
        %v1146 = vmax.f32 %v1137, 0.0
        %v1147 = vpack.c.bf16 %v1141, %v1139
        %v1148 = vpack.c.bf16 %v1142, %v1140
        %v1149 = vpack.c.bf16 %v1145, %v1143
        %v1150 = vpack.c.bf16 %v1146, %v1144
        %v1151 = vld [vmem:[#allocation4] sm:$0xff]
        %v1152 = vld [vmem:[#allocation4 + $0x8] sm:$0xff]
        %v1153 = vld [vmem:[#allocation4 + $0x10] sm:$0xff]
        %v1154 = vld [vmem:[#allocation4 + $0x18] sm:$0xff]
        %v1155 = vld [vmem:[#allocation4 + $0x20] sm:$0xff]
        %v1156 = vld [vmem:[#allocation4 + $0x28] sm:$0xff]
        %v1157 = vld [vmem:[#allocation4 + $0x30] sm:$0xff]
        %v1158 = vld [vmem:[#allocation4 + $0x38] sm:$0xff]
        %v1159 = vld [vmem:[#allocation4 + $0x40] sm:$0xff]
        %v1160 = vld [vmem:[#allocation4 + $0x48] sm:$0xff]
        %v1161 = vld [vmem:[#allocation4 + $0x50] sm:$0xff]
        %v1162 = vld [vmem:[#allocation4 + $0x58] sm:$0xff]
        %v1163 = vld [vmem:[#allocation4 + $0x60] sm:$0xff]
        %v1164 = vld [vmem:[#allocation4 + $0x68] sm:$0xff]
        %v1165 = vld [vmem:[#allocation4 + $0x70] sm:$0xff]
        %v1166 = vld [vmem:[#allocation4 + $0x78] sm:$0xff]
        %v1167 = vld [vmem:[#allocation4 + $0x80] sm:$0xff]
        %v1168 = vld [vmem:[#allocation4 + $0x88] sm:$0xff]
        %v1169 = vld [vmem:[#allocation4 + $0x90] sm:$0xff]
        %v1170 = vld [vmem:[#allocation4 + $0x98] sm:$0xff]
        %v1171 = vld [vmem:[#allocation4 + $0xa0] sm:$0xff]
        %v1172 = vld [vmem:[#allocation4 + $0xa8] sm:$0xff]
        %v1173 = vld [vmem:[#allocation4 + $0xb0] sm:$0xff]
        %v1174 = vld [vmem:[#allocation4 + $0xb8] sm:$0xff]
        %v1175 = vld [vmem:[#allocation4 + $0xc0] sm:$0xff]
        %v1176 = vld [vmem:[#allocation4 + $0xc8] sm:$0xff]
        %v1177 = vld [vmem:[#allocation4 + $0xd0] sm:$0xff]
        %v1178 = vld [vmem:[#allocation4 + $0xd8] sm:$0xff]
        %v1179 = vld [vmem:[#allocation4 + $0xe0] sm:$0xff]
        %v1180 = vld [vmem:[#allocation4 + $0xe8] sm:$0xff]
        %v1181 = vld [vmem:[#allocation4 + $0xf0] sm:$0xff]
        %v1182 = vld [vmem:[#allocation4 + $0xf8] sm:$0xff]
        %v1183 = vld [vmem:[#allocation4 + $0x100] sm:$0xff]
        %v1184 = vld [vmem:[#allocation4 + $0x108] sm:$0xff]
        %v1185 = vld [vmem:[#allocation4 + $0x110] sm:$0xff]
        %v1186 = vld [vmem:[#allocation4 + $0x118] sm:$0xff]
        %v1187 = vld [vmem:[#allocation4 + $0x120] sm:$0xff]
        %v1188 = vld [vmem:[#allocation4 + $0x128] sm:$0xff]
        %v1189 = vld [vmem:[#allocation4 + $0x130] sm:$0xff]
        %v1190 = vld [vmem:[#allocation4 + $0x138] sm:$0xff]
        %v1191 = vld [vmem:[#allocation4 + $0x140] sm:$0xff]
        %v1192 = vld [vmem:[#allocation4 + $0x148] sm:$0xff]
        %v1193 = vld [vmem:[#allocation4 + $0x150] sm:$0xff]
        %v1194 = vld [vmem:[#allocation4 + $0x158] sm:$0xff]
        %v1195 = vld [vmem:[#allocation4 + $0x160] sm:$0xff]
        %v1196 = vld [vmem:[#allocation4 + $0x168] sm:$0xff]
        %v1197 = vld [vmem:[#allocation4 + $0x170] sm:$0xff]
        %v1198 = vld [vmem:[#allocation4 + $0x178] sm:$0xff]
        %v1199 = vld [vmem:[#allocation4 + $0x180] sm:$0xff]
        %v1200 = vld [vmem:[#allocation4 + $0x188] sm:$0xff]
        %v1201 = vld [vmem:[#allocation4 + $0x190] sm:$0xff]
        %v1202 = vld [vmem:[#allocation4 + $0x198] sm:$0xff]
        %v1203 = vld [vmem:[#allocation4 + $0x1a0] sm:$0xff]
        %v1204 = vld [vmem:[#allocation4 + $0x1a8] sm:$0xff]
        %v1205 = vld [vmem:[#allocation4 + $0x1b0] sm:$0xff]
        %v1206 = vld [vmem:[#allocation4 + $0x1b8] sm:$0xff]
        %v1207 = vld [vmem:[#allocation4 + $0x1c0] sm:$0xff]
        %v1208 = vld [vmem:[#allocation4 + $0x1c8] sm:$0xff]
        %v1209 = vld [vmem:[#allocation4 + $0x1d0] sm:$0xff]
        %v1210 = vld [vmem:[#allocation4 + $0x1d8] sm:$0xff]
        %v1211 = vld [vmem:[#allocation4 + $0x1e0] sm:$0xff]
        %v1212 = vld [vmem:[#allocation4 + $0x1e8] sm:$0xff]
        %v1213 = vld [vmem:[#allocation4 + $0x1f0] sm:$0xff]
        %v1214 = vld [vmem:[#allocation4 + $0x1f8] sm:$0xff]
        %v1215 = vld [vmem:[%s4] sm:$0xf]
        %v1217 = vlaneseq
        %v1218 = vshrl.u32 %v1217, 7
        %v1219 = vsub.s32 0, %v1218
        %v1220 = vrot.slane %v1215, %v1219
        %v1221 = vlaneseq
        %v1222 = vshrl.u32 %v1221, 7
        %v1223 = vsub.s32 1, %v1222
        %v1224 = vrot.slane %v1215, %v1223
        %v1225 = vlaneseq
        %v1226 = vshrl.u32 %v1225, 7
        %v1227 = vsub.s32 2, %v1226
        %v1228 = vrot.slane %v1215, %v1227
        %v1229 = vlaneseq
        %v1230 = vshrl.u32 %v1229, 7
        %v1231 = vsub.s32 3, %v1230
        %v1232 = vrot.slane %v1215, %v1231
        %v1301 = vunpack.c.l.b16 %v1151
        %v1302 = vunpack.c.h.b16 %v1151
        %v1303 = vunpack.c.l.b16 %v1152
        %v1304 = vunpack.c.h.b16 %v1152
        %v1305 = vunpack.c.l.b16 %v1153
        %v1306 = vunpack.c.h.b16 %v1153
        %v1307 = vunpack.c.l.b16 %v1154
        %v1308 = vunpack.c.h.b16 %v1154
        %v1309 = vunpack.c.l.b16 %v1155
        %v1310 = vunpack.c.h.b16 %v1155
        %v1311 = vunpack.c.l.b16 %v1156
        %v1312 = vunpack.c.h.b16 %v1156
        %v1313 = vunpack.c.l.b16 %v1157
        %v1314 = vunpack.c.h.b16 %v1157
        %v1315 = vunpack.c.l.b16 %v1158
        %v1316 = vunpack.c.h.b16 %v1158
        %v1317 = vunpack.c.l.b16 %v1159
        %v1318 = vunpack.c.h.b16 %v1159
        %v1319 = vunpack.c.l.b16 %v1160
        %v1320 = vunpack.c.h.b16 %v1160
        %v1321 = vunpack.c.l.b16 %v1161
        %v1322 = vunpack.c.h.b16 %v1161
        %v1323 = vunpack.c.l.b16 %v1162
        %v1324 = vunpack.c.h.b16 %v1162
        %v1325 = vunpack.c.l.b16 %v1163
        %v1326 = vunpack.c.h.b16 %v1163
        %v1327 = vunpack.c.l.b16 %v1164
        %v1328 = vunpack.c.h.b16 %v1164
        %v1329 = vunpack.c.l.b16 %v1165
        %v1330 = vunpack.c.h.b16 %v1165
        %v1331 = vunpack.c.l.b16 %v1166
        %v1332 = vunpack.c.h.b16 %v1166
        %v1333 = vunpack.c.l.b16 %v1167
        %v1334 = vunpack.c.h.b16 %v1167
        %v1335 = vunpack.c.l.b16 %v1168
        %v1336 = vunpack.c.h.b16 %v1168
        %v1337 = vunpack.c.l.b16 %v1169
        %v1338 = vunpack.c.h.b16 %v1169
        %v1339 = vunpack.c.l.b16 %v1170
        %v1340 = vunpack.c.h.b16 %v1170
        %v1341 = vunpack.c.l.b16 %v1171
        %v1342 = vunpack.c.h.b16 %v1171
        %v1343 = vunpack.c.l.b16 %v1172
        %v1344 = vunpack.c.h.b16 %v1172
        %v1345 = vunpack.c.l.b16 %v1173
        %v1346 = vunpack.c.h.b16 %v1173
        %v1347 = vunpack.c.l.b16 %v1174
        %v1348 = vunpack.c.h.b16 %v1174
        %v1349 = vunpack.c.l.b16 %v1175
        %v1350 = vunpack.c.h.b16 %v1175
        %v1351 = vunpack.c.l.b16 %v1176
        %v1352 = vunpack.c.h.b16 %v1176
        %v1353 = vunpack.c.l.b16 %v1177
        %v1354 = vunpack.c.h.b16 %v1177
        %v1355 = vunpack.c.l.b16 %v1178
        %v1356 = vunpack.c.h.b16 %v1178
        %v1357 = vunpack.c.l.b16 %v1179
        %v1358 = vunpack.c.h.b16 %v1179
        %v1359 = vunpack.c.l.b16 %v1180
        %v1360 = vunpack.c.h.b16 %v1180
        %v1361 = vunpack.c.l.b16 %v1181
        %v1362 = vunpack.c.h.b16 %v1181
        %v1363 = vunpack.c.l.b16 %v1182
        %v1364 = vunpack.c.h.b16 %v1182
        %v1365 = vunpack.c.l.b16 %v1183
        %v1366 = vunpack.c.h.b16 %v1183
        %v1367 = vunpack.c.l.b16 %v1184
        %v1368 = vunpack.c.h.b16 %v1184
        %v1369 = vunpack.c.l.b16 %v1185
        %v1370 = vunpack.c.h.b16 %v1185
        %v1371 = vunpack.c.l.b16 %v1186
        %v1372 = vunpack.c.h.b16 %v1186
        %v1373 = vunpack.c.l.b16 %v1187
        %v1374 = vunpack.c.h.b16 %v1187
        %v1375 = vunpack.c.l.b16 %v1188
        %v1376 = vunpack.c.h.b16 %v1188
        %v1377 = vunpack.c.l.b16 %v1189
        %v1378 = vunpack.c.h.b16 %v1189
        %v1379 = vunpack.c.l.b16 %v1190
        %v1380 = vunpack.c.h.b16 %v1190
        %v1381 = vunpack.c.l.b16 %v1191
        %v1382 = vunpack.c.h.b16 %v1191
        %v1383 = vunpack.c.l.b16 %v1192
        %v1384 = vunpack.c.h.b16 %v1192
        %v1385 = vunpack.c.l.b16 %v1193
        %v1386 = vunpack.c.h.b16 %v1193
        %v1387 = vunpack.c.l.b16 %v1194
        %v1388 = vunpack.c.h.b16 %v1194
        %v1389 = vunpack.c.l.b16 %v1195
        %v1390 = vunpack.c.h.b16 %v1195
        %v1391 = vunpack.c.l.b16 %v1196
        %v1392 = vunpack.c.h.b16 %v1196
        %v1393 = vunpack.c.l.b16 %v1197
        %v1394 = vunpack.c.h.b16 %v1197
        %v1395 = vunpack.c.l.b16 %v1198
        %v1396 = vunpack.c.h.b16 %v1198
        %v1397 = vunpack.c.l.b16 %v1199
        %v1398 = vunpack.c.h.b16 %v1199
        %v1399 = vunpack.c.l.b16 %v1200
        %v1400 = vunpack.c.h.b16 %v1200
        %v1401 = vunpack.c.l.b16 %v1201
        %v1402 = vunpack.c.h.b16 %v1201
        %v1403 = vunpack.c.l.b16 %v1202
        %v1404 = vunpack.c.h.b16 %v1202
        %v1405 = vunpack.c.l.b16 %v1203
        %v1406 = vunpack.c.h.b16 %v1203
        %v1407 = vunpack.c.l.b16 %v1204
        %v1408 = vunpack.c.h.b16 %v1204
        %v1409 = vunpack.c.l.b16 %v1205
        %v1410 = vunpack.c.h.b16 %v1205
        %v1411 = vunpack.c.l.b16 %v1206
        %v1412 = vunpack.c.h.b16 %v1206
        %v1413 = vunpack.c.l.b16 %v1207
        %v1414 = vunpack.c.h.b16 %v1207
        %v1415 = vunpack.c.l.b16 %v1208
        %v1416 = vunpack.c.h.b16 %v1208
        %v1417 = vunpack.c.l.b16 %v1209
        %v1418 = vunpack.c.h.b16 %v1209
        %v1419 = vunpack.c.l.b16 %v1210
        %v1420 = vunpack.c.h.b16 %v1210
        %v1421 = vunpack.c.l.b16 %v1211
        %v1422 = vunpack.c.h.b16 %v1211
        %v1423 = vunpack.c.l.b16 %v1212
        %v1424 = vunpack.c.h.b16 %v1212
        %v1425 = vunpack.c.l.b16 %v1213
        %v1426 = vunpack.c.h.b16 %v1213
        %v1427 = vunpack.c.l.b16 %v1214
        %v1428 = vunpack.c.h.b16 %v1214
        %v1429 = vpack.c.b16 %v1305, %v1301
        %v1430 = vpack.c.b16 %v1306, %v1302
        %v1431 = vpack.c.b16 %v1307, %v1303
        %v1432 = vpack.c.b16 %v1308, %v1304
        %v1433 = vpack.c.b16 %v1313, %v1309
        %v1434 = vpack.c.b16 %v1314, %v1310
        %v1435 = vpack.c.b16 %v1315, %v1311
        %v1436 = vpack.c.b16 %v1316, %v1312
        %v1437 = vpack.c.b16 %v1321, %v1317
        %v1438 = vpack.c.b16 %v1322, %v1318
        %v1439 = vpack.c.b16 %v1323, %v1319
        %v1440 = vpack.c.b16 %v1324, %v1320
        %v1441 = vpack.c.b16 %v1329, %v1325
        %v1442 = vpack.c.b16 %v1330, %v1326
        %v1443 = vpack.c.b16 %v1331, %v1327
        %v1444 = vpack.c.b16 %v1332, %v1328
        %v1445 = vpack.c.b16 %v1337, %v1333
        %v1446 = vpack.c.b16 %v1338, %v1334
        %v1447 = vpack.c.b16 %v1339, %v1335
        %v1448 = vpack.c.b16 %v1340, %v1336
        %v1449 = vpack.c.b16 %v1345, %v1341
        %v1450 = vpack.c.b16 %v1346, %v1342
        %v1451 = vpack.c.b16 %v1347, %v1343
        %v1452 = vpack.c.b16 %v1348, %v1344
        %v1453 = vpack.c.b16 %v1353, %v1349
        %v1454 = vpack.c.b16 %v1354, %v1350
        %v1455 = vpack.c.b16 %v1355, %v1351
        %v1456 = vpack.c.b16 %v1356, %v1352
        %v1457 = vpack.c.b16 %v1361, %v1357
        %v1458 = vpack.c.b16 %v1362, %v1358
        %v1459 = vpack.c.b16 %v1363, %v1359
        %v1460 = vpack.c.b16 %v1364, %v1360
        %v1461 = vpack.c.b16 %v1369, %v1365
        %v1462 = vpack.c.b16 %v1370, %v1366
        %v1463 = vpack.c.b16 %v1371, %v1367
        %v1464 = vpack.c.b16 %v1372, %v1368
        %v1465 = vpack.c.b16 %v1377, %v1373
        %v1466 = vpack.c.b16 %v1378, %v1374
        %v1467 = vpack.c.b16 %v1379, %v1375
        %v1468 = vpack.c.b16 %v1380, %v1376
        %v1469 = vpack.c.b16 %v1385, %v1381
        %v1470 = vpack.c.b16 %v1386, %v1382
        %v1471 = vpack.c.b16 %v1387, %v1383
        %v1472 = vpack.c.b16 %v1388, %v1384
        %v1473 = vpack.c.b16 %v1393, %v1389
        %v1474 = vpack.c.b16 %v1394, %v1390
        %v1475 = vpack.c.b16 %v1395, %v1391
        %v1476 = vpack.c.b16 %v1396, %v1392
        %v1477 = vpack.c.b16 %v1401, %v1397
        %v1478 = vpack.c.b16 %v1402, %v1398
        %v1479 = vpack.c.b16 %v1403, %v1399
        %v1480 = vpack.c.b16 %v1404, %v1400
        %v1481 = vpack.c.b16 %v1409, %v1405
        %v1482 = vpack.c.b16 %v1410, %v1406
        %v1483 = vpack.c.b16 %v1411, %v1407
        %v1484 = vpack.c.b16 %v1412, %v1408
        %v1485 = vpack.c.b16 %v1417, %v1413
        %v1486 = vpack.c.b16 %v1418, %v1414
        %v1487 = vpack.c.b16 %v1419, %v1415
        %v1488 = vpack.c.b16 %v1420, %v1416
        %v1489 = vpack.c.b16 %v1425, %v1421
        %v1490 = vpack.c.b16 %v1426, %v1422
        %v1491 = vpack.c.b16 %v1427, %v1423
        %v1492 = vpack.c.b16 %v1428, %v1424
        %1557 = vmatprep.subr.bf16.mxu0 %v1430
        %1558 = vmatpush1.bf16.msra.mxu0 %v1429
        %1559 = vmatprep.subr.bf16.mxu0 %v1434
        %1560 = vmatpush1.bf16.msra.mxu0 %v1433
        %1561 = vmatprep.subr.bf16.mxu0 %v1438
        %1562 = vmatpush1.bf16.msra.mxu0 %v1437
        %1563 = vmatprep.subr.bf16.mxu0 %v1442
        %1564 = vmatpush1.bf16.msra.mxu0 %v1441
        %1565 = vmatprep.subr.bf16.mxu0 %v1446
        %1566 = vmatpush1.bf16.msra.mxu0 %v1445
        %1567 = vmatprep.subr.bf16.mxu0 %v1450
        %1568 = vmatpush1.bf16.msra.mxu0 %v1449
        %1569 = vmatprep.subr.bf16.mxu0 %v1454
        %1570 = vmatpush1.bf16.msra.mxu0 %v1453
        %1571 = vmatprep.subr.bf16.mxu0 %v1458
        %1572 = vmatpush1.bf16.msra.mxu0 %v1457
        %1573 = vmatprep.subr.bf16.mxu0 %v1462
        %1574 = vmatpush1.bf16.msra.mxu0 %v1461
        %1575 = vmatprep.subr.bf16.mxu0 %v1466
        %1576 = vmatpush1.bf16.msra.mxu0 %v1465
        %1577 = vmatprep.subr.bf16.mxu0 %v1470
        %1578 = vmatpush1.bf16.msra.mxu0 %v1469
        %1579 = vmatprep.subr.bf16.mxu0 %v1474
        %1580 = vmatpush1.bf16.msra.mxu0 %v1473
        %1581 = vmatprep.subr.bf16.mxu0 %v1478
        %1582 = vmatpush1.bf16.msra.mxu0 %v1477
        %1583 = vmatprep.subr.bf16.mxu0 %v1482
        %1584 = vmatpush1.bf16.msra.mxu0 %v1481
        %1585 = vmatprep.subr.bf16.mxu0 %v1486
        %1586 = vmatpush1.bf16.msra.mxu0 %v1485
        %1587 = vmatprep.subr.bf16.mxu0 %v1490
        %1588 = vmatpush1.bf16.msra.mxu0 %v1489
        %1589 = vmatprep.mubr.bf16.mxu0 %v1148
        %1590 = vmatmul.mubr.bf16.gmra.mrb[0].mxu0 %v1147
        %v1591 = vpop.f32.mrb[0].mxu0
        %v1592 = vadd.f32 %v1220, %v1591
        %v1593 = vpop.f32.mrb[0].mxu0
        %v1594 = vadd.f32 %v1224, %v1593
        %v1595 = vpop.f32.mrb[0].mxu0
        %v1596 = vadd.f32 %v1220, %v1595
        %v1597 = vpop.f32.mrb[0].mxu0
        %v1598 = vadd.f32 %v1224, %v1597
        %1599 = vmatprep.mubr.bf16.mxu0 %v1150
        %1600 = vmatmul.mubr.bf16.gmra.mrb[0].mxu0 %v1149
        %v1601 = vpop.f32.mrb[0].mxu0
        %v1602 = vadd.f32 %v1220, %v1601
        %v1603 = vpop.f32.mrb[0].mxu0
        %v1604 = vadd.f32 %v1224, %v1603
        %v1605 = vpop.f32.mrb[0].mxu0
        %v1606 = vadd.f32 %v1220, %v1605
        %v1607 = vpop.f32.mrb[0].mxu0
        %v1608 = vadd.f32 %v1224, %v1607
        %1609 = vdwg.mxu0
        %1610 = vmatprep.subr.bf16.mxu0 %v1432
        %1611 = vmatpush1.bf16.msra.mxu0 %v1431
        %1612 = vmatprep.subr.bf16.mxu0 %v1436
        %1613 = vmatpush1.bf16.msra.mxu0 %v1435
        %1614 = vmatprep.subr.bf16.mxu0 %v1440
        %1615 = vmatpush1.bf16.msra.mxu0 %v1439
        %1616 = vmatprep.subr.bf16.mxu0 %v1444
        %1617 = vmatpush1.bf16.msra.mxu0 %v1443
        %1618 = vmatprep.subr.bf16.mxu0 %v1448
        %1619 = vmatpush1.bf16.msra.mxu0 %v1447
        %1620 = vmatprep.subr.bf16.mxu0 %v1452
        %1621 = vmatpush1.bf16.msra.mxu0 %v1451
        %1622 = vmatprep.subr.bf16.mxu0 %v1456
        %1623 = vmatpush1.bf16.msra.mxu0 %v1455
        %1624 = vmatprep.subr.bf16.mxu0 %v1460
        %1625 = vmatpush1.bf16.msra.mxu0 %v1459
        %1626 = vmatprep.subr.bf16.mxu0 %v1464
        %1627 = vmatpush1.bf16.msra.mxu0 %v1463
        %1628 = vmatprep.subr.bf16.mxu0 %v1468
        %1629 = vmatpush1.bf16.msra.mxu0 %v1467
        %1630 = vmatprep.subr.bf16.mxu0 %v1472
        %1631 = vmatpush1.bf16.msra.mxu0 %v1471
        %1632 = vmatprep.subr.bf16.mxu0 %v1476
        %1633 = vmatpush1.bf16.msra.mxu0 %v1475
        %1634 = vmatprep.subr.bf16.mxu0 %v1480
        %1635 = vmatpush1.bf16.msra.mxu0 %v1479
        %1636 = vmatprep.subr.bf16.mxu0 %v1484
        %1637 = vmatpush1.bf16.msra.mxu0 %v1483
        %1638 = vmatprep.subr.bf16.mxu0 %v1488
        %1639 = vmatpush1.bf16.msra.mxu0 %v1487
        %1640 = vmatprep.subr.bf16.mxu0 %v1492
        %1641 = vmatpush1.bf16.msra.mxu0 %v1491
        %1642 = vmatprep.mubr.bf16.mxu0 %v1148
        %1643 = vmatmul.mubr.bf16.gmra.mrb[0].mxu0 %v1147
        %v1644 = vpop.f32.mrb[0].mxu0
        %v1645 = vadd.f32 %v1228, %v1644
        %v1646 = vpop.f32.mrb[0].mxu0
        %v1647 = vadd.f32 %v1232, %v1646
        %v1648 = vpop.f32.mrb[0].mxu0
        %v1649 = vadd.f32 %v1228, %v1648
        %v1650 = vpop.f32.mrb[0].mxu0
        %v1651 = vadd.f32 %v1232, %v1650
        %1652 = vmatprep.mubr.bf16.mxu0 %v1150
        %1653 = vmatmul.mubr.bf16.gmra.mrb[0].mxu0 %v1149
        %v1654 = vpop.f32.mrb[0].mxu0
        %v1655 = vadd.f32 %v1228, %v1654
        %v1656 = vpop.f32.mrb[0].mxu0
        %v1657 = vadd.f32 %v1232, %v1656
        %v1658 = vpop.f32.mrb[0].mxu0
        %v1659 = vadd.f32 %v1228, %v1658
        %v1660 = vpop.f32.mrb[0].mxu0
        %v1661 = vadd.f32 %v1232, %v1660
        %1662 = vdwg.mxu0
        %v1663 = vmax.f32 %v1592, 0.0
        %v1664 = vmax.f32 %v1594, 0.0
        %v1665 = vmax.f32 %v1645, 0.0
        %v1666 = vmax.f32 %v1647, 0.0
        %v1667 = vmax.f32 %v1596, 0.0
        %v1668 = vmax.f32 %v1598, 0.0
        %v1669 = vmax.f32 %v1649, 0.0
        %v1670 = vmax.f32 %v1651, 0.0
        %v1671 = vmax.f32 %v1602, 0.0
        %v1672 = vmax.f32 %v1604, 0.0
        %v1673 = vmax.f32 %v1655, 0.0
        %v1674 = vmax.f32 %v1657, 0.0
        %v1675 = vmax.f32 %v1606, 0.0
        %v1676 = vmax.f32 %v1608, 0.0
        %v1677 = vmax.f32 %v1659, 0.0
        %v1678 = vmax.f32 %v1661, 0.0
        %v1679 = vpack.c.bf16 %v1667, %v1663
        %v1680 = vpack.c.bf16 %v1668, %v1664
        %v1681 = vpack.c.bf16 %v1669, %v1665
        %v1682 = vpack.c.bf16 %v1670, %v1666
        %v1683 = vpack.c.bf16 %v1675, %v1671
        %v1684 = vpack.c.bf16 %v1676, %v1672
        %v1685 = vpack.c.bf16 %v1677, %v1673
        %v1686 = vpack.c.bf16 %v1678, %v1674
        %v1687 = vld [vmem:[%s5] sm:$0xf]
        %v1688 = vld [vmem:[%s5 + $0x4] sm:$0xf]
        %v1689 = vld [vmem:[%s5 + $0x8] sm:$0xf]
        %v1690 = vld [vmem:[%s5 + $0xc] sm:$0xf]
        %v1691 = vld [vmem:[%s5 + $0x10] sm:$0xf]
        %v1692 = vld [vmem:[%s5 + $0x14] sm:$0xf]
        %v1693 = vld [vmem:[%s5 + $0x18] sm:$0xf]
        %v1694 = vld [vmem:[%s5 + $0x1c] sm:$0xf]
        %v1695 = vld [vmem:[%s5 + $0x20] sm:$0xf]
        %v1696 = vld [vmem:[%s5 + $0x24] sm:$0xf]
        %v1697 = vld [vmem:[%s5 + $0x28] sm:$0xf]
        %v1698 = vld [vmem:[%s5 + $0x2c] sm:$0xf]
        %v1699 = vld [vmem:[%s5 + $0x30] sm:$0xf]
        %v1700 = vld [vmem:[%s5 + $0x34] sm:$0xf]
        %v1701 = vld [vmem:[%s5 + $0x38] sm:$0xf]
        %v1702 = vld [vmem:[%s5 + $0x3c] sm:$0xf]
        %v1703 = vld [vmem:[%s5 + $0x40] sm:$0xf]
        %v1704 = vld [vmem:[%s5 + $0x44] sm:$0xf]
        %v1705 = vld [vmem:[%s5 + $0x48] sm:$0xf]
        %v1706 = vld [vmem:[%s5 + $0x4c] sm:$0xf]
        %v1707 = vld [vmem:[%s5 + $0x50] sm:$0xf]
        %v1708 = vld [vmem:[%s5 + $0x54] sm:$0xf]
        %v1709 = vld [vmem:[%s5 + $0x58] sm:$0xf]
        %v1710 = vld [vmem:[%s5 + $0x5c] sm:$0xf]
        %v1711 = vld [vmem:[%s5 + $0x60] sm:$0xf]
        %v1712 = vld [vmem:[%s5 + $0x64] sm:$0xf]
        %v1713 = vld [vmem:[%s5 + $0x68] sm:$0xf]
        %v1714 = vld [vmem:[%s5 + $0x6c] sm:$0xf]
        %v1715 = vld [vmem:[%s5 + $0x70] sm:$0xf]
        %v1716 = vld [vmem:[%s5 + $0x74] sm:$0xf]
        %v1717 = vld [vmem:[%s5 + $0x78] sm:$0xf]
        %v1718 = vld [vmem:[%s5 + $0x7c] sm:$0xf]
        %v1719 = vld [vmem:[%s5 + $0x80] sm:$0xf]
        %v1720 = vld [vmem:[%s5 + $0x84] sm:$0xf]
        %v1721 = vld [vmem:[%s5 + $0x88] sm:$0xf]
        %v1722 = vld [vmem:[%s5 + $0x8c] sm:$0xf]
        %v1723 = vld [vmem:[%s5 + $0x90] sm:$0xf]
        %v1724 = vld [vmem:[%s5 + $0x94] sm:$0xf]
        %v1725 = vld [vmem:[%s5 + $0x98] sm:$0xf]
        %v1726 = vld [vmem:[%s5 + $0x9c] sm:$0xf]
        %v1727 = vld [vmem:[%s5 + $0xa0] sm:$0xf]
        %v1728 = vld [vmem:[%s5 + $0xa4] sm:$0xf]
        %v1729 = vld [vmem:[%s5 + $0xa8] sm:$0xf]
        %v1730 = vld [vmem:[%s5 + $0xac] sm:$0xf]
        %v1731 = vld [vmem:[%s5 + $0xb0] sm:$0xf]
        %v1732 = vld [vmem:[%s5 + $0xb4] sm:$0xf]
        %v1733 = vld [vmem:[%s5 + $0xb8] sm:$0xf]
        %v1734 = vld [vmem:[%s5 + $0xbc] sm:$0xf]
        %v1735 = vld [vmem:[%s5 + $0xc0] sm:$0xf]
        %v1736 = vld [vmem:[%s5 + $0xc4] sm:$0xf]
        %v1737 = vld [vmem:[%s5 + $0xc8] sm:$0xf]
        %v1738 = vld [vmem:[%s5 + $0xcc] sm:$0xf]
        %v1739 = vld [vmem:[%s5 + $0xd0] sm:$0xf]
        %v1740 = vld [vmem:[%s5 + $0xd4] sm:$0xf]
        %v1741 = vld [vmem:[%s5 + $0xd8] sm:$0xf]
        %v1742 = vld [vmem:[%s5 + $0xdc] sm:$0xf]
        %v1743 = vld [vmem:[%s5 + $0xe0] sm:$0xf]
        %v1744 = vld [vmem:[%s5 + $0xe4] sm:$0xf]
        %v1745 = vld [vmem:[%s5 + $0xe8] sm:$0xf]
        %v1746 = vld [vmem:[%s5 + $0xec] sm:$0xf]
        %v1747 = vld [vmem:[%s5 + $0xf0] sm:$0xf]
        %v1748 = vld [vmem:[%s5 + $0xf4] sm:$0xf]
        %v1749 = vld [vmem:[%s5 + $0xf8] sm:$0xf]
        %v1750 = vld [vmem:[%s5 + $0xfc] sm:$0xf]
        %v1751 = vld [vmem:[%s6] sm:$0x1]
        %v1753 = vlaneseq
        %v1754 = vshrl.u32 %v1753, 7
        %v1755 = vsub.s32 0, %v1754
        %v1756 = vrot.slane %v1751, %v1755
        %v1822 = vunpack.c.l.b16 %v1687
        %v1823 = vunpack.c.l.b16 %v1688
        %v1824 = vunpack.c.l.b16 %v1689
        %v1825 = vunpack.c.l.b16 %v1690
        %v1826 = vunpack.c.l.b16 %v1691
        %v1827 = vunpack.c.l.b16 %v1692
        %v1828 = vunpack.c.l.b16 %v1693
        %v1829 = vunpack.c.l.b16 %v1694
        %v1830 = vunpack.c.l.b16 %v1695
        %v1831 = vunpack.c.l.b16 %v1696
        %v1832 = vunpack.c.l.b16 %v1697
        %v1833 = vunpack.c.l.b16 %v1698
        %v1834 = vunpack.c.l.b16 %v1699
        %v1835 = vunpack.c.l.b16 %v1700
        %v1836 = vunpack.c.l.b16 %v1701
        %v1837 = vunpack.c.l.b16 %v1702
        %v1838 = vunpack.c.l.b16 %v1703
        %v1839 = vunpack.c.l.b16 %v1704
        %v1840 = vunpack.c.l.b16 %v1705
        %v1841 = vunpack.c.l.b16 %v1706
        %v1842 = vunpack.c.l.b16 %v1707
        %v1843 = vunpack.c.l.b16 %v1708
        %v1844 = vunpack.c.l.b16 %v1709
        %v1845 = vunpack.c.l.b16 %v1710
        %v1846 = vunpack.c.l.b16 %v1711
        %v1847 = vunpack.c.l.b16 %v1712
        %v1848 = vunpack.c.l.b16 %v1713
        %v1849 = vunpack.c.l.b16 %v1714
        %v1850 = vunpack.c.l.b16 %v1715
        %v1851 = vunpack.c.l.b16 %v1716
        %v1852 = vunpack.c.l.b16 %v1717
        %v1853 = vunpack.c.l.b16 %v1718
        %v1854 = vunpack.c.l.b16 %v1719
        %v1855 = vunpack.c.l.b16 %v1720
        %v1856 = vunpack.c.l.b16 %v1721
        %v1857 = vunpack.c.l.b16 %v1722
        %v1858 = vunpack.c.l.b16 %v1723
        %v1859 = vunpack.c.l.b16 %v1724
        %v1860 = vunpack.c.l.b16 %v1725
        %v1861 = vunpack.c.l.b16 %v1726
        %v1862 = vunpack.c.l.b16 %v1727
        %v1863 = vunpack.c.l.b16 %v1728
        %v1864 = vunpack.c.l.b16 %v1729
        %v1865 = vunpack.c.l.b16 %v1730
        %v1866 = vunpack.c.l.b16 %v1731
        %v1867 = vunpack.c.l.b16 %v1732
        %v1868 = vunpack.c.l.b16 %v1733
        %v1869 = vunpack.c.l.b16 %v1734
        %v1870 = vunpack.c.l.b16 %v1735
        %v1871 = vunpack.c.l.b16 %v1736
        %v1872 = vunpack.c.l.b16 %v1737
        %v1873 = vunpack.c.l.b16 %v1738
        %v1874 = vunpack.c.l.b16 %v1739
        %v1875 = vunpack.c.l.b16 %v1740
        %v1876 = vunpack.c.l.b16 %v1741
        %v1877 = vunpack.c.l.b16 %v1742
        %v1878 = vunpack.c.l.b16 %v1743
        %v1879 = vunpack.c.l.b16 %v1744
        %v1880 = vunpack.c.l.b16 %v1745
        %v1881 = vunpack.c.l.b16 %v1746
        %v1882 = vunpack.c.l.b16 %v1747
        %v1883 = vunpack.c.l.b16 %v1748
        %v1884 = vunpack.c.l.b16 %v1749
        %v1885 = vunpack.c.l.b16 %v1750
        %v1886 = vpack.c.b16 %v1823, %v1822
        %v1887 = vpack.c.b16 %v1825, %v1824
        %v1888 = vpack.c.b16 %v1827, %v1826
        %v1889 = vpack.c.b16 %v1829, %v1828
        %v1890 = vpack.c.b16 %v1831, %v1830
        %v1891 = vpack.c.b16 %v1833, %v1832
        %v1892 = vpack.c.b16 %v1835, %v1834
        %v1893 = vpack.c.b16 %v1837, %v1836
        %v1894 = vpack.c.b16 %v1839, %v1838
        %v1895 = vpack.c.b16 %v1841, %v1840
        %v1896 = vpack.c.b16 %v1843, %v1842
        %v1897 = vpack.c.b16 %v1845, %v1844
        %v1898 = vpack.c.b16 %v1847, %v1846
        %v1899 = vpack.c.b16 %v1849, %v1848
        %v1900 = vpack.c.b16 %v1851, %v1850
        %v1901 = vpack.c.b16 %v1853, %v1852
        %v1902 = vpack.c.b16 %v1855, %v1854
        %v1903 = vpack.c.b16 %v1857, %v1856
        %v1904 = vpack.c.b16 %v1859, %v1858
        %v1905 = vpack.c.b16 %v1861, %v1860
        %v1906 = vpack.c.b16 %v1863, %v1862
        %v1907 = vpack.c.b16 %v1865, %v1864
        %v1908 = vpack.c.b16 %v1867, %v1866
        %v1909 = vpack.c.b16 %v1869, %v1868
        %v1910 = vpack.c.b16 %v1871, %v1870
        %v1911 = vpack.c.b16 %v1873, %v1872
        %v1912 = vpack.c.b16 %v1875, %v1874
        %v1913 = vpack.c.b16 %v1877, %v1876
        %v1914 = vpack.c.b16 %v1879, %v1878
        %v1915 = vpack.c.b16 %v1881, %v1880
        %v1916 = vpack.c.b16 %v1883, %v1882
        %v1917 = vpack.c.b16 %v1885, %v1884
        %1950 = vmatprep.subr.bf16.mxu0 0
        %1951 = vmatpush1.bf16.msra.mxu0 %v1886
        %1952 = vmatprep.subr.bf16.mxu0 0
        %1953 = vmatpush1.bf16.msra.mxu0 %v1887
        %1954 = vmatprep.subr.bf16.mxu0 0
        %1955 = vmatpush1.bf16.msra.mxu0 %v1888
        %1956 = vmatprep.subr.bf16.mxu0 0
        %1957 = vmatpush1.bf16.msra.mxu0 %v1889
        %1958 = vmatprep.subr.bf16.mxu0 0
        %1959 = vmatpush1.bf16.msra.mxu0 %v1890
        %1960 = vmatprep.subr.bf16.mxu0 0
        %1961 = vmatpush1.bf16.msra.mxu0 %v1891
        %1962 = vmatprep.subr.bf16.mxu0 0
        %1963 = vmatpush1.bf16.msra.mxu0 %v1892
        %1964 = vmatprep.subr.bf16.mxu0 0
        %1965 = vmatpush1.bf16.msra.mxu0 %v1893
        %1966 = vmatprep.subr.bf16.mxu0 0
        %1967 = vmatpush1.bf16.msra.mxu0 %v1894
        %1968 = vmatprep.subr.bf16.mxu0 0
        %1969 = vmatpush1.bf16.msra.mxu0 %v1895
        %1970 = vmatprep.subr.bf16.mxu0 0
        %1971 = vmatpush1.bf16.msra.mxu0 %v1896
        %1972 = vmatprep.subr.bf16.mxu0 0
        %1973 = vmatpush1.bf16.msra.mxu0 %v1897
        %1974 = vmatprep.subr.bf16.mxu0 0
        %1975 = vmatpush1.bf16.msra.mxu0 %v1898
        %1976 = vmatprep.subr.bf16.mxu0 0
        %1977 = vmatpush1.bf16.msra.mxu0 %v1899
        %1978 = vmatprep.subr.bf16.mxu0 0
        %1979 = vmatpush1.bf16.msra.mxu0 %v1900
        %1980 = vmatprep.subr.bf16.mxu0 0
        %1981 = vmatpush1.bf16.msra.mxu0 %v1901
        %1982 = vmatprep.mubr.bf16.mxu0 %v1680
        %1983 = vmatmul.mubr.bf16.gmra.mrb[0].mxu0 %v1679
        %v1984 = vpop.f32.mrb[0].mxu0
        %v1985 = vadd.f32 %v1756, %v1984
        %v1986 = vpop.f32.mrb[0].mxu0
        %v1987 = vpop.f32.mrb[0].mxu0
        %v1988 = vadd.f32 %v1756, %v1987
        %v1989 = vpop.f32.mrb[0].mxu0
        %1990 = vmatprep.mubr.bf16.mxu0 %v1684
        %1991 = vmatmul.mubr.bf16.gmra.mrb[0].mxu0 %v1683
        %v1992 = vpop.f32.mrb[0].mxu0
        %v1993 = vadd.f32 %v1756, %v1992
        %v1994 = vpop.f32.mrb[0].mxu0
        %v1995 = vpop.f32.mrb[0].mxu0
        %v1996 = vadd.f32 %v1756, %v1995
        %v1997 = vpop.f32.mrb[0].mxu0
        %1998 = vdwg.mxu0
        %1999 = vmatprep.subr.bf16.mxu0 0
        %2000 = vmatpush1.bf16.msra.mxu0 %v1902
        %2001 = vmatprep.subr.bf16.mxu0 0
        %2002 = vmatpush1.bf16.msra.mxu0 %v1903
        %2003 = vmatprep.subr.bf16.mxu0 0
        %2004 = vmatpush1.bf16.msra.mxu0 %v1904
        %2005 = vmatprep.subr.bf16.mxu0 0
        %2006 = vmatpush1.bf16.msra.mxu0 %v1905
        %2007 = vmatprep.subr.bf16.mxu0 0
        %2008 = vmatpush1.bf16.msra.mxu0 %v1906
        %2009 = vmatprep.subr.bf16.mxu0 0
        %2010 = vmatpush1.bf16.msra.mxu0 %v1907
        %2011 = vmatprep.subr.bf16.mxu0 0
        %2012 = vmatpush1.bf16.msra.mxu0 %v1908
        %2013 = vmatprep.subr.bf16.mxu0 0
        %2014 = vmatpush1.bf16.msra.mxu0 %v1909
        %2015 = vmatprep.subr.bf16.mxu0 0
        %2016 = vmatpush1.bf16.msra.mxu0 %v1910
        %2017 = vmatprep.subr.bf16.mxu0 0
        %2018 = vmatpush1.bf16.msra.mxu0 %v1911
        %2019 = vmatprep.subr.bf16.mxu0 0
        %2020 = vmatpush1.bf16.msra.mxu0 %v1912
        %2021 = vmatprep.subr.bf16.mxu0 0
        %2022 = vmatpush1.bf16.msra.mxu0 %v1913
        %2023 = vmatprep.subr.bf16.mxu0 0
        %2024 = vmatpush1.bf16.msra.mxu0 %v1914
        %2025 = vmatprep.subr.bf16.mxu0 0
        %2026 = vmatpush1.bf16.msra.mxu0 %v1915
        %2027 = vmatprep.subr.bf16.mxu0 0
        %2028 = vmatpush1.bf16.msra.mxu0 %v1916
        %2029 = vmatprep.subr.bf16.mxu0 0
        %2030 = vmatpush1.bf16.msra.mxu0 %v1917
        %2031 = vmatprep.mubr.bf16.mxu0 %v1682
        %2032 = vmatmul.mubr.bf16.gmra.mrb[0].mxu0 %v1681
        %v2033 = vpop.f32.mrb[0].mxu0
        %v2034 = vadd.f32 %v1985, %v2033
        %v2035 = vpop.f32.mrb[0].mxu0
        %v2036 = vpop.f32.mrb[0].mxu0
        %v2037 = vadd.f32 %v1988, %v2036
        %v2038 = vpop.f32.mrb[0].mxu0
        %2039 = vmatprep.mubr.bf16.mxu0 %v1686
        %2040 = vmatmul.mubr.bf16.gmra.mrb[0].mxu0 %v1685
        %v2041 = vpop.f32.mrb[0].mxu0
        %v2042 = vadd.f32 %v1993, %v2041
        %v2043 = vpop.f32.mrb[0].mxu0
        %v2044 = vpop.f32.mrb[0].mxu0
        %v2045 = vadd.f32 %v1996, %v2044
        %v2046 = vpop.f32.mrb[0].mxu0
        %2047 = vdwg.mxu0
        %vm2048 = vcmask 130048
        %2049 = vst.msk [vmem:[%s313] sm:$0xff] %vm2048, %v2034
        %2050 = vst.msk [vmem:[%s313 + $0x8] sm:$0xff] %vm2048, %v2037
        %2051 = vst.msk [vmem:[%s313 + $0x10] sm:$0xff] %vm2048, %v2042
        %2052 = vst.msk [vmem:[%s313 + $0x18] sm:$0xff] %vm2048, %v2045
        %s2053 = smul.u32 4, %s20
        %p2054 = scmp.lt.s32.totalorder %s2053, 7
        %s2055 = scalar_select %p2054, %s2053, 7
        %s2056 = smul.addr %s2055, 8
        %s2057 = scalar_lea.vmem %s7, %s2056
        // Predicated region
        $region57: #{tpu_custom_call.1} parent=47 // pred_check
          %p2058 = pneg %p190
        $region58: #{tpu_custom_call.1} parent=47 // pred_check_branch
          %2060 = sbr.rel (%p2058) target = $region60
        $region59: #{tpu_custom_call.1} parent=47 // pred_region
          %s2061 = smul.u32 4, %s20
        $region60: #{tpu_custom_call.1} parent=47 // pred_fallthru
          _
      $region48: #{tpu_custom_call.1} parent=5 // pred_fallthru
        _
      %p2062 = scmp.le.s32.totalorder 2, %s15
      // Predicated region
      $region61: #{tpu_custom_call.1} parent=5 // pred_check
        %p2063 = pneg %p2062
      $region62: #{tpu_custom_call.1} parent=5 // pred_check_branch
        %2065 = sbr.rel (%p2063) target = $region64
      $region63: #{tpu_custom_call.1} parent=5 // pred_region
        %s2066 = ssub.s32 %s15, 2
        // Predicated region
        $region65: #{tpu_custom_call.1} parent=63 // pred_check
          %p2067 = pneg %p196
        $region66: #{tpu_custom_call.1} parent=63 // pred_check_branch
          %2069 = sbr.rel (%p2067) target = $region68
        $region67: #{tpu_custom_call.1} parent=63 // pred_region
          %s2070 = smul.u32 4, %s21
          %p2071 = scmp.lt.s32.totalorder %s2070, 7
          %s2072 = scalar_select %p2071, %s2070, 7
          %s2073 = smul.addr %s2072, 8
          %s2074 = scalar_lea.vmem %s7, %s2073
        $region68: #{tpu_custom_call.1} parent=63 // pred_fallthru
          _
      $region64: #{tpu_custom_call.1} parent=5 // pred_fallthru
        _
    $region6: #{tpu_custom_call.1} parent=1 // loop_footer
      %s19 = sadd.s32 1, %s15
    $region7: #{tpu_custom_call.1} parent=1 // loop_footer_branch
      %14 = sbr.rel target = $region3
    $region8: #{tpu_custom_call.1} parent=1 // loop_exit
      _
    %2075 = vsyncpa [#allocation3], 1
    %s2076 = scalar_lea.sflag [#allocation3], 1
    %2077 = vsyncpa %s2076, 1
    %2078 = vsyncpa [#allocation5], 1

</llo_original>
